<compile_context>
chip_gen: v7x
topology: tpu7x:2x2x1
jax: 0.10.0
libtpu: 0.0.40
codegen_flags: <defaults>
</compile_context>

<pallas_src>
import functools

import jax
import jax.numpy as jnp
from jax.experimental import pallas as pl
from jax.experimental.pallas import tpu as pltpu


# ----------------------------------------------------------------------------
# Faithful port of the reference module (empty forward).
# ----------------------------------------------------------------------------
class Attention:
    """JAX port of temporal_attention_rcnn.Attention (empty module)."""

    def __init__(self):
        # Reference __init__ defines no parameters.
        pass

    def forward(self):
        # Reference forward takes no inputs and returns None.
        return None

    __call__ = forward


# Squeezed-dim sentinel (fall back to None on older jax versions).
try:
    _SQUEEZED = pl.Squeezed()
except AttributeError:  # pragma: no cover
    _SQUEEZED = None

_LANES = 128  # vreg lane width


def _supports_bf16_eup() -> bool:
    """bf16 transcendentals are native on v6e / v7x; v5e and older emulate."""
    try:
        kind = jax.devices()[0].device_kind.lower()
    except Exception:  # pragma: no cover
        return False
    return ("v6" in kind) or ("v7" in kind)


# ----------------------------------------------------------------------------
# Flash-attention forward kernel (online softmax, batch squeezed into grid).
# ----------------------------------------------------------------------------
def _flash_fwd_kernel(q_ref, k_ref, v_ref, o_ref,
                      q_sc, m_sc, l_sc, acc_sc,
                      *, sm_scale, exp_bf16):
    kv = pl.program_id(2)

    tk = k_ref.shape[0]
    d = q_ref.shape[-1]
    reps_k = tk // _LANES
    reps_d = d // _LANES

    @pl.when(kv == 0)
    def _():
        m_sc[...] = jnp.full_like(m_sc, -jnp.inf)
        l_sc[...] = jnp.zeros_like(l_sc)
        acc_sc[...] = jnp.zeros_like(acc_sc)
        # Fold sm_scale into q once per q tile (scale in f32, store in q dtype).
        q_sc[...] = (q_ref[...].astype(jnp.float32) * sm_scale).astype(q_sc.dtype)

    # Scores for this (q-tile, kv-tile): MXU matmul contracting on D,
    # f32 accumulation, no materialized K transpose.
    s = jax.lax.dot_general(
        q_sc[...], k_ref[...],
        dimension_numbers=(((1,), (1,)), ((), ())),
        preferred_element_type=jnp.float32,
    )  # (tq, tk)

    # Online softmax update; m / l are lane-replicated (tq, 128) f32.
    m_prev = m_sc[...]
    m_curr = s.max(axis=-1, keepdims=True)            # (tq, 1)
    m_next = jnp.maximum(m_prev, m_curr)               # (tq, 128), lane-replicated

    m_next_k = m_next if reps_k == 1 else jnp.tile(m_next, (1, reps_k))
    x = s - m_next_k                                    # (tq, tk), all <= 0

    if exp_bf16:
        p = jnp.exp(x.astype(jnp.bfloat16))             # EUP in bf16 (v6e/v7x)
        l_curr = jnp.sum(p.astype(jnp.float32), axis=-1, keepdims=True)
        p_mm = p.astype(v_ref.dtype)
    else:
        p = jnp.exp(x)                                  # f32 EUP (v5e)
        l_curr = jnp.sum(p, axis=-1, keepdims=True)
        p_mm = p.astype(v_ref.dtype)

    alpha = jnp.exp(m_prev - m_next)                    # (tq, 128), lane-replicated
    l_sc[...] = alpha * l_sc[...] + l_curr

    pv = jnp.dot(p_mm, v_ref[...], preferred_element_type=jnp.float32)  # (tq, D)
    alpha_d = alpha if reps_d == 1 else jnp.tile(alpha, (1, reps_d))
    acc_sc[...] = alpha_d * acc_sc[...] + pv
    m_sc[...] = m_next

    @pl.when(kv == pl.num_programs(2) - 1)
    def _():
        inv_l = pl.reciprocal(l_sc[...], approx=True)   # (tq, 128)
        inv_l_d = inv_l if reps_d == 1 else jnp.tile(inv_l, (1, reps_d))
        o_ref[...] = (acc_sc[...] * inv_l_d).astype(o_ref.dtype)


def flash_attention(q, k, v, *, tq=128, tk=256, exp_bf16=None):
    """Flash-style attention forward: softmax(q @ k^T / sqrt(D)) @ v."""
    B, S, D = q.shape
    assert k.shape == (B, S, D) and v.shape == (B, S, D)
    tq = min(tq, S)
    tk = min(tk, S)
    assert S % tq == 0 and S % tk == 0, "S must be divisible by tq and tk"
    assert D % _LANES == 0 and tk % _LANES == 0 and tq % 8 == 0

    if exp_bf16 is None:
        exp_bf16 = _supports_bf16_eup() and q.dtype == jnp.bfloat16

    sm_scale = 1.0 / (D ** 0.5)
    kernel = functools.partial(_flash_fwd_kernel,
                               sm_scale=sm_scale, exp_bf16=exp_bf16)

    return pl.pallas_call(
        kernel,
        out_shape=jax.ShapeDtypeStruct((B, S, D), q.dtype),
        grid_spec=pltpu.PrefetchScalarGridSpec(
            num_scalar_prefetch=0,
            grid=(B, S // tq, S // tk),
            in_specs=[
                pl.BlockSpec((_SQUEEZED, tq, D), lambda b, qi, ki: (b, qi, 0)),
                pl.BlockSpec((_SQUEEZED, tk, D), lambda b, qi, ki: (b, ki, 0)),
                pl.BlockSpec((_SQUEEZED, tk, D), lambda b, qi, ki: (b, ki, 0)),
            ],
            out_specs=pl.BlockSpec((_SQUEEZED, tq, D),
                                   lambda b, qi, ki: (b, qi, 0)),
            scratch_shapes=[
                pltpu.VMEM((tq, D), q.dtype),           # sm_scale-folded q tile
                pltpu.VMEM((tq, _LANES), jnp.float32),  # running max m (lane-replicated)
                pltpu.VMEM((tq, _LANES), jnp.float32),  # running sum l (lane-replicated)
                pltpu.VMEM((tq, D), jnp.float32),       # output accumulator
            ],
        ),
        compiler_params=pltpu.CompilerParams(
            dimension_semantics=("parallel", "parallel", "arbitrary"),
        ),
    )(q, k, v)


def _attention_reference(q, k, v):
    """Pure-JAX reference (f32 math) for correctness checking."""
    D = q.shape[-1]
    s = jnp.einsum(
        "bqd,bkd->bqk", q.astype(jnp.float32), k.astype(jnp.float32)
    ) / (D ** 0.5)
    p = jax.nn.softmax(s, axis=-1)
    return jnp.einsum("bqk,bkd->bqd", p, v.astype(jnp.float32)).astype(q.dtype)


if __name__ == "__main__":
    # 1) Faithful reference-module forward: consumes nothing, returns None.
    attn = Attention()
    assert attn() is None

    # 2) Deterministic small inputs for the flash-attention kernel.
    #    B=2, seq=512, head dim=128 (MXU/lane aligned), bf16 activations.
    B, S, D = 2, 512, 128
    key = jax.random.PRNGKey(0)
    kq, kk, kv_ = jax.random.split(key, 3)
    q = jax.random.normal(kq, (B, S, D), dtype=jnp.float32).astype(jnp.bfloat16)
    k = jax.random.normal(kk, (B, S, D), dtype=jnp.float32).astype(jnp.bfloat16)
    v = jax.random.normal(kv_, (B, S, D), dtype=jnp.float32).astype(jnp.bfloat16)

    out = flash_attention(q, k, v, tq=128, tk=256)
    jax.block_until_ready(out)

    ref = _attention_reference(q, k, v)
    assert out.shape == ref.shape and out.dtype == ref.dtype
    err = jnp.max(jnp.abs(out.astype(jnp.float32) - ref.astype(jnp.float32)))
    assert bool(err < 2e-2), f"max abs err {err}"

    print("KERNEL_OK")
</pallas_src>

<mosaic_0001>
module attributes {stable_mosaic.version = 11 : i64} {
  func.func @_flash_fwd_kernel(%arg0: i32, %arg1: i32, %arg2: i32, %arg3: memref<1x128x128xbf16, #tpu.memory_space<vmem>>, %arg4: memref<1x256x128xbf16, #tpu.memory_space<vmem>>, %arg5: memref<1x256x128xbf16, #tpu.memory_space<vmem>>, %arg6: memref<1x128x128xbf16, #tpu.memory_space<vmem>>, %arg7: memref<128x128xbf16, #tpu.memory_space<vmem>>, %arg8: memref<128x128xf32, #tpu.memory_space<vmem>>, %arg9: memref<128x128xf32, #tpu.memory_space<vmem>>, %arg10: memref<128x128xf32, #tpu.memory_space<vmem>>) attributes {dimension_semantics = [#tpu.dimension_semantics<parallel>, #tpu.dimension_semantics<parallel>, #tpu.dimension_semantics<arbitrary>], iteration_bounds = array<i64: 2, 4, 2>, scalar_prefetch = 0 : i64, scratch_operands = 4 : i64, tpu.core_type = #tpu.core_type<tc>, window_params = [{transform_indices = @transform_0, window_bounds = array<i64: 1, 128, 128>}, {transform_indices = @transform_1, window_bounds = array<i64: 1, 256, 128>}, {transform_indices = @transform_2, window_bounds = array<i64: 1, 256, 128>}, {transform_indices = @transform_3, window_bounds = array<i64: 1, 128, 128>}]} {
    %c0_i32 = arith.constant 0 : i32
    %0 = arith.cmpi eq, %arg2, %c0_i32 : i32
    %1 = arith.extui %0 : i1 to i32
    %c0_i32_0 = arith.constant 0 : i32
    %2 = arith.cmpi ne, %1, %c0_i32_0 : i32
    scf.if %2 {
      %cst_24 = arith.constant 0xFF800000 : f32
      %36 = vector.broadcast %cst_24 : f32 to vector<128x128xf32>
      %c0_25 = arith.constant 0 : index
      %c0_26 = arith.constant 0 : index
      %37 = vector.load %arg8[%c0_25, %c0_26] : memref<128x128xf32, #tpu.memory_space<vmem>>, vector<128x128xf32>
      tpu.vector_store %arg8[%c0_25, %c0_26], %36 {strides = array<i32>} : memref<128x128xf32, #tpu.memory_space<vmem>>, vector<128x128xf32>,
      %cst_27 = arith.constant 0.000000e+00 : f32
      %38 = vector.broadcast %cst_27 : f32 to vector<128x128xf32>
      %c0_28 = arith.constant 0 : index
      %c0_29 = arith.constant 0 : index
      %39 = vector.load %arg9[%c0_28, %c0_29] : memref<128x128xf32, #tpu.memory_space<vmem>>, vector<128x128xf32>
      tpu.vector_store %arg9[%c0_28, %c0_29], %38 {strides = array<i32>} : memref<128x128xf32, #tpu.memory_space<vmem>>, vector<128x128xf32>,
      %cst_30 = arith.constant 0.000000e+00 : f32
      %40 = vector.broadcast %cst_30 : f32 to vector<128x128xf32>
      %c0_31 = arith.constant 0 : index
      %c0_32 = arith.constant 0 : index
      %41 = vector.load %arg10[%c0_31, %c0_32] : memref<128x128xf32, #tpu.memory_space<vmem>>, vector<128x128xf32>
      tpu.vector_store %arg10[%c0_31, %c0_32], %40 {strides = array<i32>} : memref<128x128xf32, #tpu.memory_space<vmem>>, vector<128x128xf32>,
      %c0_33 = arith.constant 0 : index
      %c0_34 = arith.constant 0 : index
      %c0_35 = arith.constant 0 : index
      %42 = vector.load %arg3[%c0_33, %c0_34, %c0_35] : memref<1x128x128xbf16, #tpu.memory_space<vmem>>, vector<1x128x128xbf16>
      %43 = vector.shape_cast %42 : vector<1x128x128xbf16> to vector<128x128xbf16>
      %44 = arith.extf %43 : vector<128x128xbf16> to vector<128x128xf32>
      %cst_36 = arith.constant 0.0883883461 : f32
      %45 = vector.broadcast %cst_36 : f32 to vector<128x128xf32>
      %46 = arith.mulf %44, %45 : vector<128x128xf32>
      %47 = arith.truncf %46 : vector<128x128xf32> to vector<128x128xbf16>
      %c0_37 = arith.constant 0 : index
      %c0_38 = arith.constant 0 : index
      %48 = vector.load %arg7[%c0_37, %c0_38] : memref<128x128xbf16, #tpu.memory_space<vmem>>, vector<128x128xbf16>
      tpu.vector_store %arg7[%c0_37, %c0_38], %47 {strides = array<i32>} : memref<128x128xbf16, #tpu.memory_space<vmem>>, vector<128x128xbf16>,
    } else {
    }
    %c0 = arith.constant 0 : index
    %c0_1 = arith.constant 0 : index
    %3 = vector.load %arg7[%c0, %c0_1] : memref<128x128xbf16, #tpu.memory_space<vmem>>, vector<128x128xbf16>
    %c0_2 = arith.constant 0 : index
    %c0_3 = arith.constant 0 : index
    %c0_4 = arith.constant 0 : index
    %4 = vector.load %arg4[%c0_2, %c0_3, %c0_4] : memref<1x256x128xbf16, #tpu.memory_space<vmem>>, vector<1x256x128xbf16>
    %5 = vector.shape_cast %4 : vector<1x256x128xbf16> to vector<256x128xbf16>
    %cst = arith.constant dense<0.000000e+00> : vector<128x256xf32>
    %6 = tpu.matmul %3, %5, %cst {dimension_numbers = #tpu.dot_dimension_numbers<[1], [1], [0], [0], [0, 0, 1, 0], [], []>} : vector<128x128xbf16>, vector<256x128xbf16>, vector<128x256xf32> -> vector<128x256xf32>
    %c0_5 = arith.constant 0 : index
    %c0_6 = arith.constant 0 : index
    %7 = vector.load %arg8[%c0_5, %c0_6] : memref<128x128xf32, #tpu.memory_space<vmem>>, vector<128x128xf32>
    %cst_7 = arith.constant dense<0xFF800000> : vector<128xf32>
    %8 = vector.multi_reduction <maximumf>, %6, %cst_7 [1] : vector<128x256xf32> to vector<128xf32>
    %9 = vector.shape_cast %8 : vector<128xf32> to vector<128x1xf32>
    %10 = vector.broadcast %9 : vector<128x1xf32> to vector<128x128xf32>
    %11 = arith.maximumf %7, %10 : vector<128x128xf32>
    %12 = tpu.concatenate %11, %11 in 1 : vector<128x128xf32>, vector<128x128xf32> -> vector<128x256xf32>
    %13 = arith.subf %6, %12 : vector<128x256xf32>
    %14 = math.exp %13 : vector<128x256xf32>
    %cst_8 = arith.constant dense<0.000000e+00> : vector<128xf32>
    %15 = vector.multi_reduction <add>, %14, %cst_8 [1] : vector<128x256xf32> to vector<128xf32>
    %16 = vector.shape_cast %15 : vector<128xf32> to vector<128x1xf32>
    %17 = arith.truncf %14 : vector<128x256xf32> to vector<128x256xbf16>
    %18 = arith.subf %7, %11 : vector<128x128xf32>
    %19 = math.exp %18 : vector<128x128xf32>
    %c0_9 = arith.constant 0 : index
    %c0_10 = arith.constant 0 : index
    %20 = vector.load %arg9[%c0_9, %c0_10] : memref<128x128xf32, #tpu.memory_space<vmem>>, vector<128x128xf32>
    %21 = arith.mulf %19, %20 : vector<128x128xf32>
    %22 = vector.broadcast %16 : vector<128x1xf32> to vector<128x128xf32>
    %23 = arith.addf %21, %22 : vector<128x128xf32>
    %c0_11 = arith.constant 0 : index
    %c0_12 = arith.constant 0 : index
    %24 = vector.load %arg9[%c0_11, %c0_12] : memref<128x128xf32, #tpu.memory_space<vmem>>, vector<128x128xf32>
    tpu.vector_store %arg9[%c0_11, %c0_12], %23 {strides = array<i32>} : memref<128x128xf32, #tpu.memory_space<vmem>>, vector<128x128xf32>,
    %c0_13 = arith.constant 0 : index
    %c0_14 = arith.constant 0 : index
    %c0_15 = arith.constant 0 : index
    %25 = vector.load %arg5[%c0_13, %c0_14, %c0_15] : memref<1x256x128xbf16, #tpu.memory_space<vmem>>, vector<1x256x128xbf16>
    %26 = vector.shape_cast %25 : vector<1x256x128xbf16> to vector<256x128xbf16>
    %cst_16 = arith.constant dense<0.000000e+00> : vector<128x128xf32>
    %27 = tpu.matmul %17, %26, %cst_16 {dimension_numbers = #tpu.dot_dimension_numbers<[1], [0], [0], [1], [0, 0, 1, 1], [], []>} : vector<128x256xbf16>, vector<256x128xbf16>, vector<128x128xf32> -> vector<128x128xf32>
    %c0_17 = arith.constant 0 : index
    %c0_18 = arith.constant 0 : index
    %28 = vector.load %arg10[%c0_17, %c0_18] : memref<128x128xf32, #tpu.memory_space<vmem>>, vector<128x128xf32>
    %29 = arith.mulf %19, %28 : vector<128x128xf32>
    %30 = arith.addf %29, %27 : vector<128x128xf32>
    %c0_19 = arith.constant 0 : index
    %c0_20 = arith.constant 0 : index
    %31 = vector.load %arg10[%c0_19, %c0_20] : memref<128x128xf32, #tpu.memory_space<vmem>>, vector<128x128xf32>
    tpu.vector_store %arg10[%c0_19, %c0_20], %30 {strides = array<i32>} : memref<128x128xf32, #tpu.memory_space<vmem>>, vector<128x128xf32>,
    %c0_21 = arith.constant 0 : index
    %c0_22 = arith.constant 0 : index
    %32 = vector.load %arg8[%c0_21, %c0_22] : memref<128x128xf32, #tpu.memory_space<vmem>>, vector<128x128xf32>
    tpu.vector_store %arg8[%c0_21, %c0_22], %11 {strides = array<i32>} : memref<128x128xf32, #tpu.memory_space<vmem>>, vector<128x128xf32>,
    %c1_i32 = arith.constant 1 : i32
    %33 = arith.cmpi eq, %arg2, %c1_i32 : i32
    %34 = arith.extui %33 : i1 to i32
    %c0_i32_23 = arith.constant 0 : i32
    %35 = arith.cmpi ne, %34, %c0_i32_23 : i32
    scf.if %35 {
      %c0_24 = arith.constant 0 : index
      %c0_25 = arith.constant 0 : index
      %36 = vector.load %arg9[%c0_24, %c0_25] : memref<128x128xf32, #tpu.memory_space<vmem>>, vector<128x128xf32>
      %37 = tpu.reciprocal %36 {approx = true} : vector<128x128xf32> -> vector<128x128xf32>
      %c0_26 = arith.constant 0 : index
      %c0_27 = arith.constant 0 : index
      %38 = vector.load %arg10[%c0_26, %c0_27] : memref<128x128xf32, #tpu.memory_space<vmem>>, vector<128x128xf32>
      %39 = arith.mulf %38, %37 : vector<128x128xf32>
      %40 = arith.truncf %39 : vector<128x128xf32> to vector<128x128xbf16>
      %c0_28 = arith.constant 0 : index
      %c0_29 = arith.constant 0 : index
      %c0_30 = arith.constant 0 : index
      %41 = vector.load %arg6[%c0_28, %c0_29, %c0_30] : memref<1x128x128xbf16, #tpu.memory_space<vmem>>, vector<1x128x128xbf16>
      %42 = vector.shape_cast %41 : vector<1x128x128xbf16> to vector<128x128xbf16>
      %43 = vector.shape_cast %40 : vector<128x128xbf16> to vector<1x128x128xbf16>
      tpu.vector_store %arg6[%c0_28, %c0_29, %c0_30], %43 {strides = array<i32>} : memref<1x128x128xbf16, #tpu.memory_space<vmem>>, vector<1x128x128xbf16>,
    } else {
    }
    return
  }
  func.func @transform_0(%arg0: i32, %arg1: i32, %arg2: i32) -> (i32, i32, i32) {
    %c0_i32 = arith.constant 0 : i32
    %c0_i32_0 = arith.constant 0 : i32
    return %arg0, %arg1, %c0_i32 : i32, i32, i32
  }
  func.func @transform_1(%arg0: i32, %arg1: i32, %arg2: i32) -> (i32, i32, i32) {
    %c0_i32 = arith.constant 0 : i32
    %c0_i32_0 = arith.constant 0 : i32
    return %arg0, %arg2, %c0_i32 : i32, i32, i32
  }
  func.func @transform_2(%arg0: i32, %arg1: i32, %arg2: i32) -> (i32, i32, i32) {
    %c0_i32 = arith.constant 0 : i32
    %c0_i32_0 = arith.constant 0 : i32
    return %arg0, %arg2, %c0_i32 : i32, i32, i32
  }
  func.func @transform_3(%arg0: i32, %arg1: i32, %arg2: i32) -> (i32, i32, i32) {
    %c0_i32 = arith.constant 0 : i32
    %c0_i32_0 = arith.constant 0 : i32
    return %arg0, %arg1, %c0_i32 : i32, i32, i32
  }
}

</mosaic_0001>

<llo_original>
// kernel: tpu_custom_call.1
$region0: #{tpu_custom_call.1}
  #allocation0 [shape = 'u32[]', space=smem, size = 0x4, offset = 0x4, fixed_abs, tag = 'smem constant byte address 0x4 - core index']
  #allocation1 [shape = 'u32[144,128]{1,0:T(1,128)}', space=vmem, size = 0x12000, scoped, tag = 'internal scratch']
  #allocation2 [shape = 'bf16[128,128]{1,0:T(16,128)(2,1)}', space=vmem, size = 0x8000, scoped, tag = 'scratch operand']
  #allocation3 [shape = 'f32[128,128]{1,0:T(8,128)}', space=vmem, size = 0x10000, scoped, tag = 'scratch operand']
  #allocation4 [shape = 'f32[128,128]{1,0:T(8,128)}', space=vmem, size = 0x10000, scoped, tag = 'scratch operand']
  #allocation5 [shape = 'f32[128,128]{1,0:T(8,128)}', space=vmem, size = 0x10000, scoped, tag = 'scratch operand']
  %s0 = inlined_call_operand.hbm [shape: bf16[2,512,128], index: 0, kind: input, shape index: {}]
  %s1 = inlined_call_operand.hbm [shape: bf16[2,512,128], index: 1, kind: input, shape index: {}]
  %s2 = inlined_call_operand.hbm [shape: bf16[2,512,128], index: 2, kind: input, shape index: {}]
  %s3 = inlined_call_operand.hbm [shape: bf16[2,512,128], index: 3, kind: output, shape index: {}]
  %s4 = sld [smem:[#allocation0]]
  $region65: #{tpu_custom_call.1} parent=0
    _
  %s6 = ssub.s32 1, %s4
  %s7 = scalar_select 0, %s6, %s4
  $region1: #{tpu_custom_call.1} parent=0
    #allocation6 [shape = 'u8[65536]{0}', space=vmem, size = 0x10000, scoped, tag = 'input window, operand 0']
    #allocation7 [shape = 's32[2]{0}', space=sflag, size = 0x8, scoped, tag = 'scoped memory for tpu_custom_call.1']
    #allocation8 [shape = 's32[2]{0}', space=sflag, size = 0x8, scoped, tag = 'scoped memory for tpu_custom_call.1']
    #allocation9 [shape = 'u8[131072]{0}', space=vmem, size = 0x20000, scoped, tag = 'input window, operand 1']
    #allocation10 [shape = 's32[2]{0}', space=sflag, size = 0x8, scoped, tag = 'scoped memory for tpu_custom_call.1']
    #allocation11 [shape = 'u8[131072]{0}', space=vmem, size = 0x20000, scoped, tag = 'input window, operand 2']
    #allocation12 [shape = 'u8[65536]{0}', space=vmem, size = 0x10000, scoped, tag = 'output window, operand 0']
    %8 = vsyncpa [#allocation7], 0
    %s9 = scalar_lea.sflag [#allocation7], 1
    %10 = vsyncpa %s9, 0
    %11 = vsyncpa [#allocation10], 0
    %s12 = scalar_lea.sflag [#allocation10], 1
    %13 = vsyncpa %s12, 0
    %14 = vsyncpa [#allocation8], 0
    %s15 = scalar_lea.sflag [#allocation8], 1
    %16 = vsyncpa %s15, 0
    loop: start=0, step=1, limit=18
    $region2: #{tpu_custom_call.1} parent=1 // loop_pre_header
      _
    $region3: #{tpu_custom_call.1} parent=1 // loop_header
      %s18 = sphi 0, %s22
      %p19 = scmp.ge.s32.totalorder %s18, 18
      %s25 = sphi 0, %s44
      %s26 = sphi 0, %s40
      %s27 = sphi 0, %s36
      %s28 = sphi 0, %s25
      %s29 = sphi 0, %s26
      %s30 = sphi 0, %s27
      %s31 = sphi 0, %s28
      %s32 = sphi 0, %s29
      %s33 = sphi 0, %s30
      %s49 = sphi 0, %s51
      %s52 = sphi 0, %s49
      %s53 = sphi 0, %s52
      %s69 = sphi 0, %s53
      %s77 = sphi 0, %s79
      %s80 = sphi 0, %s77
      %s81 = sphi 0, %s80
      %s97 = sphi 0, %s81
      %s105 = sphi 0, %s107
      %s108 = sphi 0, %s105
      %s109 = sphi 0, %s108
      %s125 = sphi 0, %s109
      %s133 = sphi 0, %s135
      %s136 = sphi 0, %s133
      %s137 = sphi 0, %s136
      %s153 = sphi 0, %s137
    $region4: #{tpu_custom_call.1} parent=1 // loop_header_branch
      %21 = sbr.rel (%p19) target = $region8
    $region5: #{tpu_custom_call.1} parent=1 // loop_body
      %s23 = ssub.s32 %s18, 1
      %s24 = ssub.s32 %s18, 2
      %s34 = sadd.s32 1, %s27
      %p35 = scmp.ge.s32.totalorder %s34, 2
      %s36 = scalar_select %p35, 0, %s34
      %s37 = sadd.s32 1, %s26
      %s38 = scalar_select %p35, %s37, %s26
      %p39 = scmp.ge.s32.totalorder %s38, 4
      %s40 = scalar_select %p39, 0, %s38
      %s41 = sadd.s32 1, %s25
      %s42 = scalar_select %p39, %s41, %s25
      %p43 = scmp.ge.s32.totalorder %s42, 2
      %s44 = scalar_select %p43, 0, %s42
      %s45 = ssub.s32 %s25, %s44
      %s46 = ssub.s32 %s26, %s40
      %s47 = sor.u32 %s45, %s46
      %p48 = scmp.eq.s32.totalorder %s47, 0
      %s50 = sadd.s32 %s49, 1
      %s51 = scalar_select %p48, %s49, %s50
      %p54 = pneg %p48
      %p55 = scmp.eq.s32.totalorder %s18, 15
      %p56 = por %p54, %p55
      %p57 = scmp.ne.s32.totalorder %s49, %s52
      %p58 = scmp.eq.s32.totalorder %s18, 0
      %p59 = por %p57, %p58
      %p60 = scmp.ne.s32.totalorder %s49, %s52
      %p61 = scmp.eq.s32.totalorder %s23, 15
      %p62 = por %p60, %p61
      %p63 = scmp.ne.s32.totalorder %s52, %s53
      %p64 = scmp.eq.s32.totalorder %s23, 0
      %p65 = por %p63, %p64
      %p66 = scmp.ne.s32.totalorder %s52, %s53
      %p67 = scmp.eq.s32.totalorder %s24, 15
      %p68 = por %p66, %p67
      %p70 = scmp.ne.s32.totalorder %s53, %s69
      %p71 = scmp.eq.s32.totalorder %s24, 0
      %p72 = por %p70, %p71
      %s73 = ssub.s32 %s25, %s44
      %s74 = ssub.s32 %s27, %s36
      %s75 = sor.u32 %s73, %s74
      %p76 = scmp.eq.s32.totalorder %s75, 0
      %s78 = sadd.s32 %s77, 1
      %s79 = scalar_select %p76, %s77, %s78
      %p82 = pneg %p76
      %p83 = scmp.eq.s32.totalorder %s18, 15
      %p84 = por %p82, %p83
      %p85 = scmp.ne.s32.totalorder %s77, %s80
      %p86 = scmp.eq.s32.totalorder %s18, 0
      %p87 = por %p85, %p86
      %p88 = scmp.ne.s32.totalorder %s77, %s80
      %p89 = scmp.eq.s32.totalorder %s23, 15
      %p90 = por %p88, %p89
      %p91 = scmp.ne.s32.totalorder %s80, %s81
      %p92 = scmp.eq.s32.totalorder %s23, 0
      %p93 = por %p91, %p92
      %p94 = scmp.ne.s32.totalorder %s80, %s81
      %p95 = scmp.eq.s32.totalorder %s24, 15
      %p96 = por %p94, %p95
      %p98 = scmp.ne.s32.totalorder %s81, %s97
      %p99 = scmp.eq.s32.totalorder %s24, 0
      %p100 = por %p98, %p99
      %s101 = ssub.s32 %s25, %s44
      %s102 = ssub.s32 %s27, %s36
      %s103 = sor.u32 %s101, %s102
      %p104 = scmp.eq.s32.totalorder %s103, 0
      %s106 = sadd.s32 %s105, 1
      %s107 = scalar_select %p104, %s105, %s106
      %p110 = pneg %p104
      %p111 = scmp.eq.s32.totalorder %s18, 15
      %p112 = por %p110, %p111
      %p113 = scmp.ne.s32.totalorder %s105, %s108
      %p114 = scmp.eq.s32.totalorder %s18, 0
      %p115 = por %p113, %p114
      %p116 = scmp.ne.s32.totalorder %s105, %s108
      %p117 = scmp.eq.s32.totalorder %s23, 15
      %p118 = por %p116, %p117
      %p119 = scmp.ne.s32.totalorder %s108, %s109
      %p120 = scmp.eq.s32.totalorder %s23, 0
      %p121 = por %p119, %p120
      %p122 = scmp.ne.s32.totalorder %s108, %s109
      %p123 = scmp.eq.s32.totalorder %s24, 15
      %p124 = por %p122, %p123
      %p126 = scmp.ne.s32.totalorder %s109, %s125
      %p127 = scmp.eq.s32.totalorder %s24, 0
      %p128 = por %p126, %p127
      %s129 = ssub.s32 %s25, %s44
      %s130 = ssub.s32 %s26, %s40
      %s131 = sor.u32 %s129, %s130
      %p132 = scmp.eq.s32.totalorder %s131, 0
      %s134 = sadd.s32 %s133, 1
      %s135 = scalar_select %p132, %s133, %s134
      %p138 = pneg %p132
      %p139 = scmp.eq.s32.totalorder %s18, 15
      %p140 = por %p138, %p139
      %p141 = scmp.ne.s32.totalorder %s133, %s136
      %p142 = scmp.eq.s32.totalorder %s18, 0
      %p143 = por %p141, %p142
      %p144 = scmp.ne.s32.totalorder %s133, %s136
      %p145 = scmp.eq.s32.totalorder %s23, 15
      %p146 = por %p144, %p145
      %p147 = scmp.ne.s32.totalorder %s136, %s137
      %p148 = scmp.eq.s32.totalorder %s23, 0
      %p149 = por %p147, %p148
      %p150 = scmp.ne.s32.totalorder %s136, %s137
      %p151 = scmp.eq.s32.totalorder %s24, 15
      %p152 = por %p150, %p151
      %p154 = scmp.ne.s32.totalorder %s137, %s153
      %p155 = scmp.eq.s32.totalorder %s24, 0
      %p156 = por %p154, %p155
      %p157 = scmp.le.s32.totalorder 1, %s18
      %p158 = scmp.lt.s32.totalorder %s18, 17
      %p159 = pnand %p157, %p158
      %p160 = pneg %p159
      // Predicated region
      $region9: #{tpu_custom_call.1} parent=5 // pred_check
        _
      $region10: #{tpu_custom_call.1} parent=5 // pred_check_branch
        %162 = sbr.rel (%p159) target = $region12
      $region11: #{tpu_custom_call.1} parent=5 // pred_region
        %s163 = ssub.s32 %s18, 1
      $region12: #{tpu_custom_call.1} parent=5 // pred_fallthru
        _
      %p164 = scmp.lt.s32.totalorder %s18, 16
      // Predicated region
      $region13: #{tpu_custom_call.1} parent=5 // pred_check
        %p165 = pneg %p164
      $region14: #{tpu_custom_call.1} parent=5 // pred_check_branch
        %167 = sbr.rel (%p165) target = $region16
      $region15: #{tpu_custom_call.1} parent=5 // pred_region
        // Predicated region
        $region17: #{tpu_custom_call.1} parent=15 // pred_check
          %p168 = pneg %p59
        $region18: #{tpu_custom_call.1} parent=15 // pred_check_branch
          %170 = sbr.rel (%p168) target = $region20
        $region19: #{tpu_custom_call.1} parent=15 // pred_region
          %s171 = sand.u32 %s49, 1
          %s172 = scalar_lea.sflag [#allocation7], %s171
          %s173 = sand.u32 %s49, 1
          %s174 = smul.addr %s173, 64
          %s175 = scalar_lea.vmem [#allocation6], %s174
          %s176 = smul.u32 16, %s26
          %s178 = ssub.s32 1024, 1024
          %179 = vsyncadd %s172, %s178
          %s180 = smul.addr %s25, 64
          %s181 = sadd.s32 %s176, %s180
          %s182 = smul.addr %s181, 64
          %s183 = scalar_lea.hbm %s0, %s182
          %s184 = sshll.u32 %s175, 4
          %s185 = int_to_ptr.vmem [resolvable:$true] %s184
          %190 = dma.hbm_to_vmem [thread:$0]  %s183, 1024, %s185, %s172, 64, 64, 4
        $region20: #{tpu_custom_call.1} parent=15 // pred_fallthru
          _
        // Predicated region
        $region21: #{tpu_custom_call.1} parent=15 // pred_check
          %p191 = pneg %p87
        $region22: #{tpu_custom_call.1} parent=15 // pred_check_branch
          %193 = sbr.rel (%p191) target = $region24
        $region23: #{tpu_custom_call.1} parent=15 // pred_region
          %s194 = sand.u32 %s18, 1
          %s195 = scalar_lea.sflag [#allocation10], %s194
          %s196 = sand.u32 %s77, 1
          %s197 = smul.addr %s196, 128
          %s198 = scalar_lea.vmem [#allocation9], %s197
          %s199 = smul.u32 32, %s27
          %s201 = ssub.s32 2048, 2048
          %202 = vsyncadd %s195, %s201
          %s203 = smul.addr %s25, 64
          %s204 = sadd.s32 %s199, %s203
          %s205 = smul.addr %s204, 64
          %s206 = scalar_lea.hbm %s1, %s205
          %s207 = sshll.u32 %s198, 4
          %s208 = int_to_ptr.vmem [resolvable:$true] %s207
          %213 = dma.hbm_to_vmem [thread:$0]  %s206, 2048, %s208, %s195, 64, 64, 4
        $region24: #{tpu_custom_call.1} parent=15 // pred_fallthru
          _
        // Predicated region
        $region25: #{tpu_custom_call.1} parent=15 // pred_check
          %p214 = pneg %p115
        $region26: #{tpu_custom_call.1} parent=15 // pred_check_branch
          %216 = sbr.rel (%p214) target = $region28
        $region27: #{tpu_custom_call.1} parent=15 // pred_region
          %s217 = sand.u32 %s18, 1
          %s218 = scalar_lea.sflag [#allocation10], %s217
          %s219 = sand.u32 %s105, 1
          %s220 = smul.addr %s219, 128
          %s221 = scalar_lea.vmem [#allocation11], %s220
          %s222 = smul.u32 32, %s27
          %s224 = ssub.s32 2048, 2048
          %225 = vsyncadd %s218, %s224
          %s226 = smul.addr %s25, 64
          %s227 = sadd.s32 %s222, %s226
          %s228 = smul.addr %s227, 64
          %s229 = scalar_lea.hbm %s2, %s228
          %s230 = sshll.u32 %s221, 4
          %s231 = int_to_ptr.vmem [resolvable:$true] %s230
          %236 = dma.hbm_to_vmem [thread:$0]  %s229, 2048, %s231, %s218, 64, 64, 4
        $region28: #{tpu_custom_call.1} parent=15 // pred_fallthru
          _
      $region16: #{tpu_custom_call.1} parent=5 // pred_fallthru
        _
      %p237 = scmp.le.s32.totalorder 1, %s18
      %p238 = scmp.lt.s32.totalorder %s18, 17
      %p239 = pnand %p237, %p238
      %p240 = pneg %p239
      // Predicated region
      $region29: #{tpu_custom_call.1} parent=5 // pred_check
        _
      $region30: #{tpu_custom_call.1} parent=5 // pred_check_branch
        %242 = sbr.rel (%p239) target = $region32
      $region31: #{tpu_custom_call.1} parent=5 // pred_region
        %s243 = ssub.s32 %s18, 1
        %s244 = sand.u32 %s52, 1
        %s245 = scalar_lea.sflag [#allocation7], %s244
        %s246 = sand.u32 %s52, 1
        %s247 = smul.addr %s246, 64
        %s248 = scalar_lea.vmem [#allocation6], %s247
        // Predicated region
        $region33: #{tpu_custom_call.1} parent=31 // pred_check
          %p249 = pneg %p65
        $region34: #{tpu_custom_call.1} parent=31 // pred_check_branch
          %251 = sbr.rel (%p249) target = $region36
        $region35: #{tpu_custom_call.1} parent=31 // pred_region
          %252 = dma.done %s245, 1024
        $region36: #{tpu_custom_call.1} parent=31 // pred_fallthru
          _
        %s253 = sand.u32 %s23, 1
        %s254 = scalar_lea.sflag [#allocation10], %s253
        %s255 = sand.u32 %s80, 1
        %s256 = smul.addr %s255, 128
        %s257 = scalar_lea.vmem [#allocation9], %s256
        // Predicated region
        $region37: #{tpu_custom_call.1} parent=31 // pred_check
          %p258 = pneg %p93
        $region38: #{tpu_custom_call.1} parent=31 // pred_check_branch
          %260 = sbr.rel (%p258) target = $region40
        $region39: #{tpu_custom_call.1} parent=31 // pred_region
          %261 = dma.done %s254, 2048
        $region40: #{tpu_custom_call.1} parent=31 // pred_fallthru
          _
        %s262 = sand.u32 %s23, 1
        %s263 = scalar_lea.sflag [#allocation10], %s262
        %s264 = sand.u32 %s108, 1
        %s265 = smul.addr %s264, 128
        %s266 = scalar_lea.vmem [#allocation11], %s265
        // Predicated region
        $region41: #{tpu_custom_call.1} parent=31 // pred_check
          %p267 = pneg %p121
        $region42: #{tpu_custom_call.1} parent=31 // pred_check_branch
          %269 = sbr.rel (%p267) target = $region44
        $region43: #{tpu_custom_call.1} parent=31 // pred_region
          %270 = dma.done %s263, 2048
        $region44: #{tpu_custom_call.1} parent=31 // pred_fallthru
          _
        %s271 = sand.u32 %s52, 1
        %s272 = scalar_lea.sflag [#allocation7], %s271
        %s273 = sand.u32 %s52, 1
        %s274 = smul.addr %s273, 64
        %s275 = scalar_lea.vmem [#allocation6], %s274
        %p276 = pneg %p65
        %p277 = pneg %p62
        %s278 = sand.u32 %s23, 1
        %s279 = scalar_lea.sflag [#allocation10], %s278
        %s280 = sand.u32 %s80, 1
        %s281 = smul.addr %s280, 128
        %s282 = scalar_lea.vmem [#allocation9], %s281
        %p283 = pneg %p93
        %p284 = pneg %p90
        %s285 = sand.u32 %s23, 1
        %s286 = scalar_lea.sflag [#allocation10], %s285
        %s287 = sand.u32 %s108, 1
        %s288 = smul.addr %s287, 128
        %s289 = scalar_lea.vmem [#allocation11], %s288
        %p290 = pneg %p121
        %p291 = pneg %p118
        %p292 = pneg %p149
        %p293 = pneg %p146
        %s294 = sand.u32 %s136, 1
        %s295 = scalar_lea.sflag [#allocation8], %s294
        %s296 = sand.u32 %s136, 1
        %s297 = smul.addr %s296, 64
        %s298 = scalar_lea.vmem [#allocation12], %s297
        %s299 = smul.u32 16, %s29
        %s300 = smul.u32 32, %s30
        %s301 = smul.u32 32, %s30
        %s302 = smul.u32 16, %s29
        %p304 = scmp.eq.s32.totalorder %s30, 0
        // Predicated region
        $region45: #{tpu_custom_call.1} parent=31 // pred_check
          %p305 = pneg %p304
        $region46: #{tpu_custom_call.1} parent=31 // pred_check_branch
          %307 = sbr.rel (%p305) target = $region48
        $region47: #{tpu_custom_call.1} parent=31 // pred_region
          %308 = vst [vmem:[#allocation3] sm:$0xff] -inf
          %309 = vst [vmem:[#allocation3 + $0x8] sm:$0xff] -inf
          %310 = vst [vmem:[#allocation3 + $0x10] sm:$0xff] -inf
          %311 = vst [vmem:[#allocation3 + $0x18] sm:$0xff] -inf
          %312 = vst [vmem:[#allocation3 + $0x20] sm:$0xff] -inf
          %313 = vst [vmem:[#allocation3 + $0x28] sm:$0xff] -inf
          %314 = vst [vmem:[#allocation3 + $0x30] sm:$0xff] -inf
          %315 = vst [vmem:[#allocation3 + $0x38] sm:$0xff] -inf
          %316 = vst [vmem:[#allocation3 + $0x40] sm:$0xff] -inf
          %317 = vst [vmem:[#allocation3 + $0x48] sm:$0xff] -inf
          %318 = vst [vmem:[#allocation3 + $0x50] sm:$0xff] -inf
          %319 = vst [vmem:[#allocation3 + $0x58] sm:$0xff] -inf
          %320 = vst [vmem:[#allocation3 + $0x60] sm:$0xff] -inf
          %321 = vst [vmem:[#allocation3 + $0x68] sm:$0xff] -inf
          %322 = vst [vmem:[#allocation3 + $0x70] sm:$0xff] -inf
          %323 = vst [vmem:[#allocation3 + $0x78] sm:$0xff] -inf
          %324 = vst [vmem:[#allocation4] sm:$0xff] 0.0
          %325 = vst [vmem:[#allocation4 + $0x8] sm:$0xff] 0.0
          %326 = vst [vmem:[#allocation4 + $0x10] sm:$0xff] 0.0
          %327 = vst [vmem:[#allocation4 + $0x18] sm:$0xff] 0.0
          %328 = vst [vmem:[#allocation4 + $0x20] sm:$0xff] 0.0
          %329 = vst [vmem:[#allocation4 + $0x28] sm:$0xff] 0.0
          %330 = vst [vmem:[#allocation4 + $0x30] sm:$0xff] 0.0
          %331 = vst [vmem:[#allocation4 + $0x38] sm:$0xff] 0.0
          %332 = vst [vmem:[#allocation4 + $0x40] sm:$0xff] 0.0
          %333 = vst [vmem:[#allocation4 + $0x48] sm:$0xff] 0.0
          %334 = vst [vmem:[#allocation4 + $0x50] sm:$0xff] 0.0
          %335 = vst [vmem:[#allocation4 + $0x58] sm:$0xff] 0.0
          %336 = vst [vmem:[#allocation4 + $0x60] sm:$0xff] 0.0
          %337 = vst [vmem:[#allocation4 + $0x68] sm:$0xff] 0.0
          %338 = vst [vmem:[#allocation4 + $0x70] sm:$0xff] 0.0
          %339 = vst [vmem:[#allocation4 + $0x78] sm:$0xff] 0.0
          %340 = vst [vmem:[#allocation5] sm:$0xff] 0.0
          %341 = vst [vmem:[#allocation5 + $0x8] sm:$0xff] 0.0
          %342 = vst [vmem:[#allocation5 + $0x10] sm:$0xff] 0.0
          %343 = vst [vmem:[#allocation5 + $0x18] sm:$0xff] 0.0
          %344 = vst [vmem:[#allocation5 + $0x20] sm:$0xff] 0.0
          %345 = vst [vmem:[#allocation5 + $0x28] sm:$0xff] 0.0
          %346 = vst [vmem:[#allocation5 + $0x30] sm:$0xff] 0.0
          %347 = vst [vmem:[#allocation5 + $0x38] sm:$0xff] 0.0
          %348 = vst [vmem:[#allocation5 + $0x40] sm:$0xff] 0.0
          %349 = vst [vmem:[#allocation5 + $0x48] sm:$0xff] 0.0
          %350 = vst [vmem:[#allocation5 + $0x50] sm:$0xff] 0.0
          %351 = vst [vmem:[#allocation5 + $0x58] sm:$0xff] 0.0
          %352 = vst [vmem:[#allocation5 + $0x60] sm:$0xff] 0.0
          %353 = vst [vmem:[#allocation5 + $0x68] sm:$0xff] 0.0
          %354 = vst [vmem:[#allocation5 + $0x70] sm:$0xff] 0.0
          %355 = vst [vmem:[#allocation5 + $0x78] sm:$0xff] 0.0
          %v356 = vld [vmem:[%s248] sm:$0xf]
          %v357 = vld [vmem:[%s248 + $0x4] sm:$0xf]
          %v358 = vld [vmem:[%s248 + $0x8] sm:$0xf]
          %v359 = vld [vmem:[%s248 + $0xc] sm:$0xf]
          %v360 = vld [vmem:[%s248 + $0x10] sm:$0xf]
          %v361 = vld [vmem:[%s248 + $0x14] sm:$0xf]
          %v362 = vld [vmem:[%s248 + $0x18] sm:$0xf]
          %v363 = vld [vmem:[%s248 + $0x1c] sm:$0xf]
          %v364 = vld [vmem:[%s248 + $0x20] sm:$0xf]
          %v365 = vld [vmem:[%s248 + $0x24] sm:$0xf]
          %v366 = vld [vmem:[%s248 + $0x28] sm:$0xf]
          %v367 = vld [vmem:[%s248 + $0x2c] sm:$0xf]
          %v368 = vld [vmem:[%s248 + $0x30] sm:$0xf]
          %v369 = vld [vmem:[%s248 + $0x34] sm:$0xf]
          %v370 = vld [vmem:[%s248 + $0x38] sm:$0xf]
          %v371 = vld [vmem:[%s248 + $0x3c] sm:$0xf]
          %v372 = vunpack.c.l.bf16 %v356
          %v373 = vunpack.c.l.bf16 %v357
          %v374 = vunpack.c.l.bf16 %v358
          %v375 = vunpack.c.l.bf16 %v359
          %v376 = vunpack.c.l.bf16 %v360
          %v377 = vunpack.c.l.bf16 %v361
          %v378 = vunpack.c.l.bf16 %v362
          %v379 = vunpack.c.l.bf16 %v363
          %v380 = vunpack.c.l.bf16 %v364
          %v381 = vunpack.c.l.bf16 %v365
          %v382 = vunpack.c.l.bf16 %v366
          %v383 = vunpack.c.l.bf16 %v367
          %v384 = vunpack.c.l.bf16 %v368
          %v385 = vunpack.c.l.bf16 %v369
          %v386 = vunpack.c.l.bf16 %v370
          %v387 = vunpack.c.l.bf16 %v371
          %v388 = vmul.f32 %v372, 0.088388346
          %v389 = vmul.f32 %v373, 0.088388346
          %v390 = vmul.f32 %v374, 0.088388346
          %v391 = vmul.f32 %v375, 0.088388346
          %v392 = vmul.f32 %v376, 0.088388346
          %v393 = vmul.f32 %v377, 0.088388346
          %v394 = vmul.f32 %v378, 0.088388346
          %v395 = vmul.f32 %v379, 0.088388346
          %v396 = vmul.f32 %v380, 0.088388346
          %v397 = vmul.f32 %v381, 0.088388346
          %v398 = vmul.f32 %v382, 0.088388346
          %v399 = vmul.f32 %v383, 0.088388346
          %v400 = vmul.f32 %v384, 0.088388346
          %v401 = vmul.f32 %v385, 0.088388346
          %v402 = vmul.f32 %v386, 0.088388346
          %v403 = vmul.f32 %v387, 0.088388346
          %v404 = vpack.c.bf16 %v389, %v388
          %v405 = vpack.c.bf16 %v391, %v390
          %v406 = vpack.c.bf16 %v393, %v392
          %v407 = vpack.c.bf16 %v395, %v394
          %v408 = vpack.c.bf16 %v397, %v396
          %v409 = vpack.c.bf16 %v399, %v398
          %v410 = vpack.c.bf16 %v401, %v400
          %v411 = vpack.c.bf16 %v403, %v402
          %412 = vst [vmem:[#allocation2] sm:$0xff] %v404
          %413 = vst [vmem:[#allocation2 + $0x8] sm:$0xff] %v405
          %414 = vst [vmem:[#allocation2 + $0x10] sm:$0xff] %v406
          %415 = vst [vmem:[#allocation2 + $0x18] sm:$0xff] %v407
          %416 = vst [vmem:[#allocation2 + $0x20] sm:$0xff] %v408
          %417 = vst [vmem:[#allocation2 + $0x28] sm:$0xff] %v409
          %418 = vst [vmem:[#allocation2 + $0x30] sm:$0xff] %v410
          %419 = vst [vmem:[#allocation2 + $0x38] sm:$0xff] %v411
        $region48: #{tpu_custom_call.1} parent=31 // pred_fallthru
          _
        %v420 = vld [vmem:[#allocation2] sm:$0xff]
        %v421 = vld [vmem:[#allocation2 + $0x8] sm:$0xff]
        %v422 = vld [vmem:[#allocation2 + $0x10] sm:$0xff]
        %v423 = vld [vmem:[#allocation2 + $0x18] sm:$0xff]
        %v424 = vld [vmem:[#allocation2 + $0x20] sm:$0xff]
        %v425 = vld [vmem:[#allocation2 + $0x28] sm:$0xff]
        %v426 = vld [vmem:[#allocation2 + $0x30] sm:$0xff]
        %v427 = vld [vmem:[#allocation2 + $0x38] sm:$0xff]
        %v428 = vld [vmem:[%s257] sm:$0xf]
        %v429 = vld [vmem:[%s257 + $0x4] sm:$0xf]
        %v430 = vld [vmem:[%s257 + $0x8] sm:$0xf]
        %v431 = vld [vmem:[%s257 + $0xc] sm:$0xf]
        %v432 = vld [vmem:[%s257 + $0x10] sm:$0xf]
        %v433 = vld [vmem:[%s257 + $0x14] sm:$0xf]
        %v434 = vld [vmem:[%s257 + $0x18] sm:$0xf]
        %v435 = vld [vmem:[%s257 + $0x1c] sm:$0xf]
        %v436 = vld [vmem:[%s257 + $0x20] sm:$0xf]
        %v437 = vld [vmem:[%s257 + $0x24] sm:$0xf]
        %v438 = vld [vmem:[%s257 + $0x28] sm:$0xf]
        %v439 = vld [vmem:[%s257 + $0x2c] sm:$0xf]
        %v440 = vld [vmem:[%s257 + $0x30] sm:$0xf]
        %v441 = vld [vmem:[%s257 + $0x34] sm:$0xf]
        %v442 = vld [vmem:[%s257 + $0x38] sm:$0xf]
        %v443 = vld [vmem:[%s257 + $0x3c] sm:$0xf]
        %v444 = vld [vmem:[%s257 + $0x40] sm:$0xf]
        %v445 = vld [vmem:[%s257 + $0x44] sm:$0xf]
        %v446 = vld [vmem:[%s257 + $0x48] sm:$0xf]
        %v447 = vld [vmem:[%s257 + $0x4c] sm:$0xf]
        %v448 = vld [vmem:[%s257 + $0x50] sm:$0xf]
        %v449 = vld [vmem:[%s257 + $0x54] sm:$0xf]
        %v450 = vld [vmem:[%s257 + $0x58] sm:$0xf]
        %v451 = vld [vmem:[%s257 + $0x5c] sm:$0xf]
        %v452 = vld [vmem:[%s257 + $0x60] sm:$0xf]
        %v453 = vld [vmem:[%s257 + $0x64] sm:$0xf]
        %v454 = vld [vmem:[%s257 + $0x68] sm:$0xf]
        %v455 = vld [vmem:[%s257 + $0x6c] sm:$0xf]
        %v456 = vld [vmem:[%s257 + $0x70] sm:$0xf]
        %v457 = vld [vmem:[%s257 + $0x74] sm:$0xf]
        %v458 = vld [vmem:[%s257 + $0x78] sm:$0xf]
        %v459 = vld [vmem:[%s257 + $0x7c] sm:$0xf]
        %v492 = vunpack.c.l.b16 %v428
        %v493 = vunpack.c.l.b16 %v429
        %v494 = vunpack.c.l.b16 %v430
        %v495 = vunpack.c.l.b16 %v431
        %v496 = vunpack.c.l.b16 %v432
        %v497 = vunpack.c.l.b16 %v433
        %v498 = vunpack.c.l.b16 %v434
        %v499 = vunpack.c.l.b16 %v435
        %v500 = vunpack.c.l.b16 %v436
        %v501 = vunpack.c.l.b16 %v437
        %v502 = vunpack.c.l.b16 %v438
        %v503 = vunpack.c.l.b16 %v439
        %v504 = vunpack.c.l.b16 %v440
        %v505 = vunpack.c.l.b16 %v441
        %v506 = vunpack.c.l.b16 %v442
        %v507 = vunpack.c.l.b16 %v443
        %v508 = vunpack.c.l.b16 %v444
        %v509 = vunpack.c.l.b16 %v445
        %v510 = vunpack.c.l.b16 %v446
        %v511 = vunpack.c.l.b16 %v447
        %v512 = vunpack.c.l.b16 %v448
        %v513 = vunpack.c.l.b16 %v449
        %v514 = vunpack.c.l.b16 %v450
        %v515 = vunpack.c.l.b16 %v451
        %v516 = vunpack.c.l.b16 %v452
        %v517 = vunpack.c.l.b16 %v453
        %v518 = vunpack.c.l.b16 %v454
        %v519 = vunpack.c.l.b16 %v455
        %v520 = vunpack.c.l.b16 %v456
        %v521 = vunpack.c.l.b16 %v457
        %v522 = vunpack.c.l.b16 %v458
        %v523 = vunpack.c.l.b16 %v459
        %v524 = vpack.c.b16 %v493, %v492
        %v525 = vpack.c.b16 %v495, %v494
        %v526 = vpack.c.b16 %v497, %v496
        %v527 = vpack.c.b16 %v499, %v498
        %v528 = vpack.c.b16 %v501, %v500
        %v529 = vpack.c.b16 %v503, %v502
        %v530 = vpack.c.b16 %v505, %v504
        %v531 = vpack.c.b16 %v507, %v506
        %v532 = vpack.c.b16 %v509, %v508
        %v533 = vpack.c.b16 %v511, %v510
        %v534 = vpack.c.b16 %v513, %v512
        %v535 = vpack.c.b16 %v515, %v514
        %v536 = vpack.c.b16 %v517, %v516
        %v537 = vpack.c.b16 %v519, %v518
        %v538 = vpack.c.b16 %v521, %v520
        %v539 = vpack.c.b16 %v523, %v522
        %556 = vmatprep.subr.bf16.mxu0 0
        %557 = vmatpush1.bf16.xpose.msra.mxu0 %v524
        %558 = vmatprep.subr.bf16.mxu0 0
        %559 = vmatpush1.bf16.xpose.msra.mxu0 %v525
        %560 = vmatprep.subr.bf16.mxu0 0
        %561 = vmatpush1.bf16.xpose.msra.mxu0 %v526
        %562 = vmatprep.subr.bf16.mxu0 0
        %563 = vmatpush1.bf16.xpose.msra.mxu0 %v527
        %564 = vmatprep.subr.bf16.mxu0 0
        %565 = vmatpush1.bf16.xpose.msra.mxu0 %v528
        %566 = vmatprep.subr.bf16.mxu0 0
        %567 = vmatpush1.bf16.xpose.msra.mxu0 %v529
        %568 = vmatprep.subr.bf16.mxu0 0
        %569 = vmatpush1.bf16.xpose.msra.mxu0 %v530
        %570 = vmatprep.subr.bf16.mxu0 0
        %571 = vmatpush1.bf16.xpose.msra.mxu0 %v531
        %572 = vmatprep.subr.bf16.mxu0 0
        %573 = vmatpush1.bf16.xpose.msra.mxu0 %v532
        %574 = vmatprep.subr.bf16.mxu0 0
        %575 = vmatpush1.bf16.xpose.msra.mxu0 %v533
        %576 = vmatprep.subr.bf16.mxu0 0
        %577 = vmatpush1.bf16.xpose.msra.mxu0 %v534
        %578 = vmatprep.subr.bf16.mxu0 0
        %579 = vmatpush1.bf16.xpose.msra.mxu0 %v535
        %580 = vmatprep.subr.bf16.mxu0 0
        %581 = vmatpush1.bf16.xpose.msra.mxu0 %v536
        %582 = vmatprep.subr.bf16.mxu0 0
        %583 = vmatpush1.bf16.xpose.msra.mxu0 %v537
        %584 = vmatprep.subr.bf16.mxu0 0
        %585 = vmatpush1.bf16.xpose.msra.mxu0 %v538
        %586 = vmatprep.subr.bf16.mxu0 0
        %587 = vmatpush1.bf16.xpose.msra.mxu0 %v539
        %588 = vmatprep.mubr.bf16.mxu0 0
        %589 = vmatmul.mubr.bf16.gmra.mrb[0].mxu0 %v420
        %v590 = vpop.f32.mrb[0].mxu0
        %v591 = vadd.f32 0.0, %v590
        %v592 = vpop.f32.mrb[0].mxu0
        %v593 = vadd.f32 0.0, %v592
        %v594 = vpop.f32.mrb[0].mxu0
        %v595 = vadd.f32 0.0, %v594
        %v596 = vpop.f32.mrb[0].mxu0
        %v597 = vadd.f32 0.0, %v596
        %598 = vmatprep.mubr.bf16.mxu0 0
        %599 = vmatmul.mubr.bf16.gmra.mrb[0].mxu0 %v421
        %v600 = vpop.f32.mrb[0].mxu0
        %v601 = vadd.f32 0.0, %v600
        %v602 = vpop.f32.mrb[0].mxu0
        %v603 = vadd.f32 0.0, %v602
        %v604 = vpop.f32.mrb[0].mxu0
        %v605 = vadd.f32 0.0, %v604
        %v606 = vpop.f32.mrb[0].mxu0
        %v607 = vadd.f32 0.0, %v606
        %608 = vmatprep.mubr.bf16.mxu0 0
        %609 = vmatmul.mubr.bf16.gmra.mrb[0].mxu0 %v422
        %v610 = vpop.f32.mrb[0].mxu0
        %v611 = vadd.f32 0.0, %v610
        %v612 = vpop.f32.mrb[0].mxu0
        %v613 = vadd.f32 0.0, %v612
        %v614 = vpop.f32.mrb[0].mxu0
        %v615 = vadd.f32 0.0, %v614
        %v616 = vpop.f32.mrb[0].mxu0
        %v617 = vadd.f32 0.0, %v616
        %618 = vmatprep.mubr.bf16.mxu0 0
        %619 = vmatmul.mubr.bf16.gmra.mrb[0].mxu0 %v423
        %v620 = vpop.f32.mrb[0].mxu0
        %v621 = vadd.f32 0.0, %v620
        %v622 = vpop.f32.mrb[0].mxu0
        %v623 = vadd.f32 0.0, %v622
        %v624 = vpop.f32.mrb[0].mxu0
        %v625 = vadd.f32 0.0, %v624
        %v626 = vpop.f32.mrb[0].mxu0
        %v627 = vadd.f32 0.0, %v626
        %628 = vmatprep.mubr.bf16.mxu0 0
        %629 = vmatmul.mubr.bf16.gmra.mrb[0].mxu0 %v424
        %v630 = vpop.f32.mrb[0].mxu0
        %v631 = vadd.f32 0.0, %v630
        %v632 = vpop.f32.mrb[0].mxu0
        %v633 = vadd.f32 0.0, %v632
        %v634 = vpop.f32.mrb[0].mxu0
        %v635 = vadd.f32 0.0, %v634
        %v636 = vpop.f32.mrb[0].mxu0
        %v637 = vadd.f32 0.0, %v636
        %638 = vmatprep.mubr.bf16.mxu0 0
        %639 = vmatmul.mubr.bf16.gmra.mrb[0].mxu0 %v425
        %v640 = vpop.f32.mrb[0].mxu0
        %v641 = vadd.f32 0.0, %v640
        %v642 = vpop.f32.mrb[0].mxu0
        %v643 = vadd.f32 0.0, %v642
        %v644 = vpop.f32.mrb[0].mxu0
        %v645 = vadd.f32 0.0, %v644
        %v646 = vpop.f32.mrb[0].mxu0
        %v647 = vadd.f32 0.0, %v646
        %648 = vmatprep.mubr.bf16.mxu0 0
        %649 = vmatmul.mubr.bf16.gmra.mrb[0].mxu0 %v426
        %v650 = vpop.f32.mrb[0].mxu0
        %v651 = vadd.f32 0.0, %v650
        %v652 = vpop.f32.mrb[0].mxu0
        %v653 = vadd.f32 0.0, %v652
        %v654 = vpop.f32.mrb[0].mxu0
        %v655 = vadd.f32 0.0, %v654
        %v656 = vpop.f32.mrb[0].mxu0
        %v657 = vadd.f32 0.0, %v656
        %658 = vmatprep.mubr.bf16.mxu0 0
        %659 = vmatmul.mubr.bf16.gmra.mrb[0].mxu0 %v427
        %v660 = vpop.f32.mrb[0].mxu0
        %v661 = vadd.f32 0.0, %v660
        %v662 = vpop.f32.mrb[0].mxu0
        %v663 = vadd.f32 0.0, %v662
        %v664 = vpop.f32.mrb[0].mxu0
        %v665 = vadd.f32 0.0, %v664
        %v666 = vpop.f32.mrb[0].mxu0
        %v667 = vadd.f32 0.0, %v666
        %668 = vdwg.mxu0
        %v669 = vld [vmem:[#allocation3] sm:$0xff]
        %v670 = vld [vmem:[#allocation3 + $0x8] sm:$0xff]
        %v671 = vld [vmem:[#allocation3 + $0x10] sm:$0xff]
        %v672 = vld [vmem:[#allocation3 + $0x18] sm:$0xff]
        %v673 = vld [vmem:[#allocation3 + $0x20] sm:$0xff]
        %v674 = vld [vmem:[#allocation3 + $0x28] sm:$0xff]
        %v675 = vld [vmem:[#allocation3 + $0x30] sm:$0xff]
        %v676 = vld [vmem:[#allocation3 + $0x38] sm:$0xff]
        %v677 = vld [vmem:[#allocation3 + $0x40] sm:$0xff]
        %v678 = vld [vmem:[#allocation3 + $0x48] sm:$0xff]
        %v679 = vld [vmem:[#allocation3 + $0x50] sm:$0xff]
        %v680 = vld [vmem:[#allocation3 + $0x58] sm:$0xff]
        %v681 = vld [vmem:[#allocation3 + $0x60] sm:$0xff]
        %v682 = vld [vmem:[#allocation3 + $0x68] sm:$0xff]
        %v683 = vld [vmem:[#allocation3 + $0x70] sm:$0xff]
        %v684 = vld [vmem:[#allocation3 + $0x78] sm:$0xff]
        %v685 = vmax.f32 %v591, %v593
        %686 = vmax.xlane.f32.xlu0 %v685
        %v687 = vpop.xlane.xlu0 %686
        %v688 = vmax.f32 %v595, %v597
        %689 = vmax.xlane.f32.xlu0 %v688
        %v690 = vpop.xlane.xlu0 %689
        %v691 = vmax.f32 %v601, %v603
        %692 = vmax.xlane.f32.xlu0 %v691
        %v693 = vpop.xlane.xlu0 %692
        %v694 = vmax.f32 %v605, %v607
        %695 = vmax.xlane.f32.xlu0 %v694
        %v696 = vpop.xlane.xlu0 %695
        %v697 = vmax.f32 %v611, %v613
        %698 = vmax.xlane.f32.xlu0 %v697
        %v699 = vpop.xlane.xlu0 %698
        %v700 = vmax.f32 %v615, %v617
        %701 = vmax.xlane.f32.xlu0 %v700
        %v702 = vpop.xlane.xlu0 %701
        %v703 = vmax.f32 %v621, %v623
        %704 = vmax.xlane.f32.xlu0 %v703
        %v705 = vpop.xlane.xlu0 %704
        %v706 = vmax.f32 %v625, %v627
        %707 = vmax.xlane.f32.xlu0 %v706
        %v708 = vpop.xlane.xlu0 %707
        %v709 = vmax.f32 %v631, %v633
        %710 = vmax.xlane.f32.xlu0 %v709
        %v711 = vpop.xlane.xlu0 %710
        %v712 = vmax.f32 %v635, %v637
        %713 = vmax.xlane.f32.xlu0 %v712
        %v714 = vpop.xlane.xlu0 %713
        %v715 = vmax.f32 %v641, %v643
        %716 = vmax.xlane.f32.xlu0 %v715
        %v717 = vpop.xlane.xlu0 %716
        %v718 = vmax.f32 %v645, %v647
        %719 = vmax.xlane.f32.xlu0 %v718
        %v720 = vpop.xlane.xlu0 %719
        %v721 = vmax.f32 %v651, %v653
        %722 = vmax.xlane.f32.xlu0 %v721
        %v723 = vpop.xlane.xlu0 %722
        %v724 = vmax.f32 %v655, %v657
        %725 = vmax.xlane.f32.xlu0 %v724
        %v726 = vpop.xlane.xlu0 %725
        %v727 = vmax.f32 %v661, %v663
        %728 = vmax.xlane.f32.xlu0 %v727
        %v729 = vpop.xlane.xlu0 %728
        %v730 = vmax.f32 %v665, %v667
        %731 = vmax.xlane.f32.xlu0 %v730
        %v732 = vpop.xlane.xlu0 %731
        %v733 = vmax.f32 %v669, %v687
        %v734 = vmax.f32 %v670, %v690
        %v735 = vmax.f32 %v671, %v693
        %v736 = vmax.f32 %v672, %v696
        %v737 = vmax.f32 %v673, %v699
        %v738 = vmax.f32 %v674, %v702
        %v739 = vmax.f32 %v675, %v705
        %v740 = vmax.f32 %v676, %v708
        %v741 = vmax.f32 %v677, %v711
        %v742 = vmax.f32 %v678, %v714
        %v743 = vmax.f32 %v679, %v717
        %v744 = vmax.f32 %v680, %v720
        %v745 = vmax.f32 %v681, %v723
        %v746 = vmax.f32 %v682, %v726
        %v747 = vmax.f32 %v683, %v729
        %v748 = vmax.f32 %v684, %v732
        %v749 = vsub.f32 %v591, %v733
        %v750 = vsub.f32 %v593, %v733
        %v751 = vsub.f32 %v595, %v734
        %v752 = vsub.f32 %v597, %v734
        %v753 = vsub.f32 %v601, %v735
        %v754 = vsub.f32 %v603, %v735
        %v755 = vsub.f32 %v605, %v736
        %v756 = vsub.f32 %v607, %v736
        %v757 = vsub.f32 %v611, %v737
        %v758 = vsub.f32 %v613, %v737
        %v759 = vsub.f32 %v615, %v738
        %v760 = vsub.f32 %v617, %v738
        %v761 = vsub.f32 %v621, %v739
        %v762 = vsub.f32 %v623, %v739
        %v763 = vsub.f32 %v625, %v740
        %v764 = vsub.f32 %v627, %v740
        %v765 = vsub.f32 %v631, %v741
        %v766 = vsub.f32 %v633, %v741
        %v767 = vsub.f32 %v635, %v742
        %v768 = vsub.f32 %v637, %v742
        %v769 = vsub.f32 %v641, %v743
        %v770 = vsub.f32 %v643, %v743
        %v771 = vsub.f32 %v645, %v744
        %v772 = vsub.f32 %v647, %v744
        %v773 = vsub.f32 %v651, %v745
        %v774 = vsub.f32 %v653, %v745
        %v775 = vsub.f32 %v655, %v746
        %v776 = vsub.f32 %v657, %v746
        %v777 = vsub.f32 %v661, %v747
        %v778 = vsub.f32 %v663, %v747
        %v779 = vsub.f32 %v665, %v748
        %v780 = vsub.f32 %v667, %v748
        %v781 = vmul.f32 %v749, 1.442695
        %v782 = vpow.pop %v781
        %v783 = vmul.f32 %v750, 1.442695
        %v784 = vpow.pop %v783
        %v785 = vmul.f32 %v751, 1.442695
        %v786 = vpow.pop %v785
        %v787 = vmul.f32 %v752, 1.442695
        %v788 = vpow.pop %v787
        %v789 = vmul.f32 %v753, 1.442695
        %v790 = vpow.pop %v789
        %v791 = vmul.f32 %v754, 1.442695
        %v792 = vpow.pop %v791
        %v793 = vmul.f32 %v755, 1.442695
        %v794 = vpow.pop %v793
        %v795 = vmul.f32 %v756, 1.442695
        %v796 = vpow.pop %v795
        %v797 = vmul.f32 %v757, 1.442695
        %v798 = vpow.pop %v797
        %v799 = vmul.f32 %v758, 1.442695
        %v800 = vpow.pop %v799
        %v801 = vmul.f32 %v759, 1.442695
        %v802 = vpow.pop %v801
        %v803 = vmul.f32 %v760, 1.442695
        %v804 = vpow.pop %v803
        %v805 = vmul.f32 %v761, 1.442695
        %v806 = vpow.pop %v805
        %v807 = vmul.f32 %v762, 1.442695
        %v808 = vpow.pop %v807
        %v809 = vmul.f32 %v763, 1.442695
        %v810 = vpow.pop %v809
        %v811 = vmul.f32 %v764, 1.442695
        %v812 = vpow.pop %v811
        %v813 = vmul.f32 %v765, 1.442695
        %v814 = vpow.pop %v813
        %v815 = vmul.f32 %v766, 1.442695
        %v816 = vpow.pop %v815
        %v817 = vmul.f32 %v767, 1.442695
        %v818 = vpow.pop %v817
        %v819 = vmul.f32 %v768, 1.442695
        %v820 = vpow.pop %v819
        %v821 = vmul.f32 %v769, 1.442695
        %v822 = vpow.pop %v821
        %v823 = vmul.f32 %v770, 1.442695
        %v824 = vpow.pop %v823
        %v825 = vmul.f32 %v771, 1.442695
        %v826 = vpow.pop %v825
        %v827 = vmul.f32 %v772, 1.442695
        %v828 = vpow.pop %v827
        %v829 = vmul.f32 %v773, 1.442695
        %v830 = vpow.pop %v829
        %v831 = vmul.f32 %v774, 1.442695
        %v832 = vpow.pop %v831
        %v833 = vmul.f32 %v775, 1.442695
        %v834 = vpow.pop %v833
        %v835 = vmul.f32 %v776, 1.442695
        %v836 = vpow.pop %v835
        %v837 = vmul.f32 %v777, 1.442695
        %v838 = vpow.pop %v837
        %v839 = vmul.f32 %v778, 1.442695
        %v840 = vpow.pop %v839
        %v841 = vmul.f32 %v779, 1.442695
        %v842 = vpow.pop %v841
        %v843 = vmul.f32 %v780, 1.442695
        %v844 = vpow.pop %v843
        %v845 = vadd.f32 %v782, %v784
        %846 = vadd.xlane.f32.xlu0 %v845
        %v847 = vpop.xlane.xlu0 %846
        %v848 = vadd.f32 %v786, %v788
        %849 = vadd.xlane.f32.xlu0 %v848
        %v850 = vpop.xlane.xlu0 %849
        %v851 = vadd.f32 %v790, %v792
        %852 = vadd.xlane.f32.xlu0 %v851
        %v853 = vpop.xlane.xlu0 %852
        %v854 = vadd.f32 %v794, %v796
        %855 = vadd.xlane.f32.xlu0 %v854
        %v856 = vpop.xlane.xlu0 %855
        %v857 = vadd.f32 %v798, %v800
        %858 = vadd.xlane.f32.xlu0 %v857
        %v859 = vpop.xlane.xlu0 %858
        %v860 = vadd.f32 %v802, %v804
        %861 = vadd.xlane.f32.xlu0 %v860
        %v862 = vpop.xlane.xlu0 %861
        %v863 = vadd.f32 %v806, %v808
        %864 = vadd.xlane.f32.xlu0 %v863
        %v865 = vpop.xlane.xlu0 %864
        %v866 = vadd.f32 %v810, %v812
        %867 = vadd.xlane.f32.xlu0 %v866
        %v868 = vpop.xlane.xlu0 %867
        %v869 = vadd.f32 %v814, %v816
        %870 = vadd.xlane.f32.xlu0 %v869
        %v871 = vpop.xlane.xlu0 %870
        %v872 = vadd.f32 %v818, %v820
        %873 = vadd.xlane.f32.xlu0 %v872
        %v874 = vpop.xlane.xlu0 %873
        %v875 = vadd.f32 %v822, %v824
        %876 = vadd.xlane.f32.xlu0 %v875
        %v877 = vpop.xlane.xlu0 %876
        %v878 = vadd.f32 %v826, %v828
        %879 = vadd.xlane.f32.xlu0 %v878
        %v880 = vpop.xlane.xlu0 %879
        %v881 = vadd.f32 %v830, %v832
        %882 = vadd.xlane.f32.xlu0 %v881
        %v883 = vpop.xlane.xlu0 %882
        %v884 = vadd.f32 %v834, %v836
        %885 = vadd.xlane.f32.xlu0 %v884
        %v886 = vpop.xlane.xlu0 %885
        %v887 = vadd.f32 %v838, %v840
        %888 = vadd.xlane.f32.xlu0 %v887
        %v889 = vpop.xlane.xlu0 %888
        %v890 = vadd.f32 %v842, %v844
        %891 = vadd.xlane.f32.xlu0 %v890
        %v892 = vpop.xlane.xlu0 %891
        %v893 = vpack.c.bf16 %v786, %v782
        %v894 = vpack.c.bf16 %v788, %v784
        %v895 = vpack.c.bf16 %v794, %v790
        %v896 = vpack.c.bf16 %v796, %v792
        %v897 = vpack.c.bf16 %v802, %v798
        %v898 = vpack.c.bf16 %v804, %v800
        %v899 = vpack.c.bf16 %v810, %v806
        %v900 = vpack.c.bf16 %v812, %v808
        %v901 = vpack.c.bf16 %v818, %v814
        %v902 = vpack.c.bf16 %v820, %v816
        %v903 = vpack.c.bf16 %v826, %v822
        %v904 = vpack.c.bf16 %v828, %v824
        %v905 = vpack.c.bf16 %v834, %v830
        %v906 = vpack.c.bf16 %v836, %v832
        %v907 = vpack.c.bf16 %v842, %v838
        %v908 = vpack.c.bf16 %v844, %v840
        %v909 = vsub.f32 %v669, %v733
        %v910 = vsub.f32 %v670, %v734
        %v911 = vsub.f32 %v671, %v735
        %v912 = vsub.f32 %v672, %v736
        %v913 = vsub.f32 %v673, %v737
        %v914 = vsub.f32 %v674, %v738
        %v915 = vsub.f32 %v675, %v739
        %v916 = vsub.f32 %v676, %v740
        %v917 = vsub.f32 %v677, %v741
        %v918 = vsub.f32 %v678, %v742
        %v919 = vsub.f32 %v679, %v743
        %v920 = vsub.f32 %v680, %v744
        %v921 = vsub.f32 %v681, %v745
        %v922 = vsub.f32 %v682, %v746
        %v923 = vsub.f32 %v683, %v747
        %v924 = vsub.f32 %v684, %v748
        %v925 = vmul.f32 %v909, 1.442695
        %v926 = vpow.pop %v925
        %v927 = vmul.f32 %v910, 1.442695
        %v928 = vpow.pop %v927
        %v929 = vmul.f32 %v911, 1.442695
        %v930 = vpow.pop %v929
        %v931 = vmul.f32 %v912, 1.442695
        %v932 = vpow.pop %v931
        %v933 = vmul.f32 %v913, 1.442695
        %v934 = vpow.pop %v933
        %v935 = vmul.f32 %v914, 1.442695
        %v936 = vpow.pop %v935
        %v937 = vmul.f32 %v915, 1.442695
        %v938 = vpow.pop %v937
        %v939 = vmul.f32 %v916, 1.442695
        %v940 = vpow.pop %v939
        %v941 = vmul.f32 %v917, 1.442695
        %v942 = vpow.pop %v941
        %v943 = vmul.f32 %v918, 1.442695
        %v944 = vpow.pop %v943
        %v945 = vmul.f32 %v919, 1.442695
        %v946 = vpow.pop %v945
        %v947 = vmul.f32 %v920, 1.442695
        %v948 = vpow.pop %v947
        %v949 = vmul.f32 %v921, 1.442695
        %v950 = vpow.pop %v949
        %v951 = vmul.f32 %v922, 1.442695
        %v952 = vpow.pop %v951
        %v953 = vmul.f32 %v923, 1.442695
        %v954 = vpow.pop %v953
        %v955 = vmul.f32 %v924, 1.442695
        %v956 = vpow.pop %v955
        %v957 = vld [vmem:[#allocation4] sm:$0xff]
        %v958 = vld [vmem:[#allocation4 + $0x8] sm:$0xff]
        %v959 = vld [vmem:[#allocation4 + $0x10] sm:$0xff]
        %v960 = vld [vmem:[#allocation4 + $0x18] sm:$0xff]
        %v961 = vld [vmem:[#allocation4 + $0x20] sm:$0xff]
        %v962 = vld [vmem:[#allocation4 + $0x28] sm:$0xff]
        %v963 = vld [vmem:[#allocation4 + $0x30] sm:$0xff]
        %v964 = vld [vmem:[#allocation4 + $0x38] sm:$0xff]
        %v965 = vld [vmem:[#allocation4 + $0x40] sm:$0xff]
        %v966 = vld [vmem:[#allocation4 + $0x48] sm:$0xff]
        %v967 = vld [vmem:[#allocation4 + $0x50] sm:$0xff]
        %v968 = vld [vmem:[#allocation4 + $0x58] sm:$0xff]
        %v969 = vld [vmem:[#allocation4 + $0x60] sm:$0xff]
        %v970 = vld [vmem:[#allocation4 + $0x68] sm:$0xff]
        %v971 = vld [vmem:[#allocation4 + $0x70] sm:$0xff]
        %v972 = vld [vmem:[#allocation4 + $0x78] sm:$0xff]
        %v973 = vmul.f32 %v926, %v957
        %v974 = vmul.f32 %v928, %v958
        %v975 = vmul.f32 %v930, %v959
        %v976 = vmul.f32 %v932, %v960
        %v977 = vmul.f32 %v934, %v961
        %v978 = vmul.f32 %v936, %v962
        %v979 = vmul.f32 %v938, %v963
        %v980 = vmul.f32 %v940, %v964
        %v981 = vmul.f32 %v942, %v965
        %v982 = vmul.f32 %v944, %v966
        %v983 = vmul.f32 %v946, %v967
        %v984 = vmul.f32 %v948, %v968
        %v985 = vmul.f32 %v950, %v969
        %v986 = vmul.f32 %v952, %v970
        %v987 = vmul.f32 %v954, %v971
        %v988 = vmul.f32 %v956, %v972
        %v989 = vadd.f32 %v973, %v847
        %v990 = vadd.f32 %v974, %v850
        %v991 = vadd.f32 %v975, %v853
        %v992 = vadd.f32 %v976, %v856
        %v993 = vadd.f32 %v977, %v859
        %v994 = vadd.f32 %v978, %v862
        %v995 = vadd.f32 %v979, %v865
        %v996 = vadd.f32 %v980, %v868
        %v997 = vadd.f32 %v981, %v871
        %v998 = vadd.f32 %v982, %v874
        %v999 = vadd.f32 %v983, %v877
        %v1000 = vadd.f32 %v984, %v880
        %v1001 = vadd.f32 %v985, %v883
        %v1002 = vadd.f32 %v986, %v886
        %v1003 = vadd.f32 %v987, %v889
        %v1004 = vadd.f32 %v988, %v892
        %1005 = vst [vmem:[#allocation4] sm:$0xff] %v989
        %1006 = vst [vmem:[#allocation4 + $0x8] sm:$0xff] %v990
        %1007 = vst [vmem:[#allocation4 + $0x10] sm:$0xff] %v991
        %1008 = vst [vmem:[#allocation4 + $0x18] sm:$0xff] %v992
        %1009 = vst [vmem:[#allocation4 + $0x20] sm:$0xff] %v993
        %1010 = vst [vmem:[#allocation4 + $0x28] sm:$0xff] %v994
        %1011 = vst [vmem:[#allocation4 + $0x30] sm:$0xff] %v995
        %1012 = vst [vmem:[#allocation4 + $0x38] sm:$0xff] %v996
        %1013 = vst [vmem:[#allocation4 + $0x40] sm:$0xff] %v997
        %1014 = vst [vmem:[#allocation4 + $0x48] sm:$0xff] %v998
        %1015 = vst [vmem:[#allocation4 + $0x50] sm:$0xff] %v999
        %1016 = vst [vmem:[#allocation4 + $0x58] sm:$0xff] %v1000
        %1017 = vst [vmem:[#allocation4 + $0x60] sm:$0xff] %v1001
        %1018 = vst [vmem:[#allocation4 + $0x68] sm:$0xff] %v1002
        %1019 = vst [vmem:[#allocation4 + $0x70] sm:$0xff] %v1003
        %1020 = vst [vmem:[#allocation4 + $0x78] sm:$0xff] %v1004
        %v1021 = vld [vmem:[%s266] sm:$0xf]
        %v1022 = vld [vmem:[%s266 + $0x4] sm:$0xf]
        %v1023 = vld [vmem:[%s266 + $0x8] sm:$0xf]
        %v1024 = vld [vmem:[%s266 + $0xc] sm:$0xf]
        %v1025 = vld [vmem:[%s266 + $0x10] sm:$0xf]
        %v1026 = vld [vmem:[%s266 + $0x14] sm:$0xf]
        %v1027 = vld [vmem:[%s266 + $0x18] sm:$0xf]
        %v1028 = vld [vmem:[%s266 + $0x1c] sm:$0xf]
        %v1029 = vld [vmem:[%s266 + $0x20] sm:$0xf]
        %v1030 = vld [vmem:[%s266 + $0x24] sm:$0xf]
        %v1031 = vld [vmem:[%s266 + $0x28] sm:$0xf]
        %v1032 = vld [vmem:[%s266 + $0x2c] sm:$0xf]
        %v1033 = vld [vmem:[%s266 + $0x30] sm:$0xf]
        %v1034 = vld [vmem:[%s266 + $0x34] sm:$0xf]
        %v1035 = vld [vmem:[%s266 + $0x38] sm:$0xf]
        %v1036 = vld [vmem:[%s266 + $0x3c] sm:$0xf]
        %v1037 = vld [vmem:[%s266 + $0x40] sm:$0xf]
        %v1038 = vld [vmem:[%s266 + $0x44] sm:$0xf]
        %v1039 = vld [vmem:[%s266 + $0x48] sm:$0xf]
        %v1040 = vld [vmem:[%s266 + $0x4c] sm:$0xf]
        %v1041 = vld [vmem:[%s266 + $0x50] sm:$0xf]
        %v1042 = vld [vmem:[%s266 + $0x54] sm:$0xf]
        %v1043 = vld [vmem:[%s266 + $0x58] sm:$0xf]
        %v1044 = vld [vmem:[%s266 + $0x5c] sm:$0xf]
        %v1045 = vld [vmem:[%s266 + $0x60] sm:$0xf]
        %v1046 = vld [vmem:[%s266 + $0x64] sm:$0xf]
        %v1047 = vld [vmem:[%s266 + $0x68] sm:$0xf]
        %v1048 = vld [vmem:[%s266 + $0x6c] sm:$0xf]
        %v1049 = vld [vmem:[%s266 + $0x70] sm:$0xf]
        %v1050 = vld [vmem:[%s266 + $0x74] sm:$0xf]
        %v1051 = vld [vmem:[%s266 + $0x78] sm:$0xf]
        %v1052 = vld [vmem:[%s266 + $0x7c] sm:$0xf]
        %v1085 = vunpack.c.l.b16 %v1021
        %v1086 = vunpack.c.l.b16 %v1022
        %v1087 = vunpack.c.l.b16 %v1023
        %v1088 = vunpack.c.l.b16 %v1024
        %v1089 = vunpack.c.l.b16 %v1025
        %v1090 = vunpack.c.l.b16 %v1026
        %v1091 = vunpack.c.l.b16 %v1027
        %v1092 = vunpack.c.l.b16 %v1028
        %v1093 = vunpack.c.l.b16 %v1029
        %v1094 = vunpack.c.l.b16 %v1030
        %v1095 = vunpack.c.l.b16 %v1031
        %v1096 = vunpack.c.l.b16 %v1032
        %v1097 = vunpack.c.l.b16 %v1033
        %v1098 = vunpack.c.l.b16 %v1034
        %v1099 = vunpack.c.l.b16 %v1035
        %v1100 = vunpack.c.l.b16 %v1036
        %v1101 = vunpack.c.l.b16 %v1037
        %v1102 = vunpack.c.l.b16 %v1038
        %v1103 = vunpack.c.l.b16 %v1039
        %v1104 = vunpack.c.l.b16 %v1040
        %v1105 = vunpack.c.l.b16 %v1041
        %v1106 = vunpack.c.l.b16 %v1042
        %v1107 = vunpack.c.l.b16 %v1043
        %v1108 = vunpack.c.l.b16 %v1044
        %v1109 = vunpack.c.l.b16 %v1045
        %v1110 = vunpack.c.l.b16 %v1046
        %v1111 = vunpack.c.l.b16 %v1047
        %v1112 = vunpack.c.l.b16 %v1048
        %v1113 = vunpack.c.l.b16 %v1049
        %v1114 = vunpack.c.l.b16 %v1050
        %v1115 = vunpack.c.l.b16 %v1051
        %v1116 = vunpack.c.l.b16 %v1052
        %v1117 = vpack.c.b16 %v1086, %v1085
        %v1118 = vpack.c.b16 %v1088, %v1087
        %v1119 = vpack.c.b16 %v1090, %v1089
        %v1120 = vpack.c.b16 %v1092, %v1091
        %v1121 = vpack.c.b16 %v1094, %v1093
        %v1122 = vpack.c.b16 %v1096, %v1095
        %v1123 = vpack.c.b16 %v1098, %v1097
        %v1124 = vpack.c.b16 %v1100, %v1099
        %v1125 = vpack.c.b16 %v1102, %v1101
        %v1126 = vpack.c.b16 %v1104, %v1103
        %v1127 = vpack.c.b16 %v1106, %v1105
        %v1128 = vpack.c.b16 %v1108, %v1107
        %v1129 = vpack.c.b16 %v1110, %v1109
        %v1130 = vpack.c.b16 %v1112, %v1111
        %v1131 = vpack.c.b16 %v1114, %v1113
        %v1132 = vpack.c.b16 %v1116, %v1115
        %1149 = vmatprep.subr.bf16.mxu0 0
        %1150 = vmatpush1.bf16.msra.mxu0 %v1117
        %1151 = vmatprep.subr.bf16.mxu0 0
        %1152 = vmatpush1.bf16.msra.mxu0 %v1118
        %1153 = vmatprep.subr.bf16.mxu0 0
        %1154 = vmatpush1.bf16.msra.mxu0 %v1119
        %1155 = vmatprep.subr.bf16.mxu0 0
        %1156 = vmatpush1.bf16.msra.mxu0 %v1120
        %1157 = vmatprep.subr.bf16.mxu0 0
        %1158 = vmatpush1.bf16.msra.mxu0 %v1121
        %1159 = vmatprep.subr.bf16.mxu0 0
        %1160 = vmatpush1.bf16.msra.mxu0 %v1122
        %1161 = vmatprep.subr.bf16.mxu0 0
        %1162 = vmatpush1.bf16.msra.mxu0 %v1123
        %1163 = vmatprep.subr.bf16.mxu0 0
        %1164 = vmatpush1.bf16.msra.mxu0 %v1124
        %1165 = vmatprep.subr.bf16.mxu0 0
        %1166 = vmatpush1.bf16.msra.mxu0 %v1125
        %1167 = vmatprep.subr.bf16.mxu0 0
        %1168 = vmatpush1.bf16.msra.mxu0 %v1126
        %1169 = vmatprep.subr.bf16.mxu0 0
        %1170 = vmatpush1.bf16.msra.mxu0 %v1127
        %1171 = vmatprep.subr.bf16.mxu0 0
        %1172 = vmatpush1.bf16.msra.mxu0 %v1128
        %1173 = vmatprep.subr.bf16.mxu0 0
        %1174 = vmatpush1.bf16.msra.mxu0 %v1129
        %1175 = vmatprep.subr.bf16.mxu0 0
        %1176 = vmatpush1.bf16.msra.mxu0 %v1130
        %1177 = vmatprep.subr.bf16.mxu0 0
        %1178 = vmatpush1.bf16.msra.mxu0 %v1131
        %1179 = vmatprep.subr.bf16.mxu0 0
        %1180 = vmatpush1.bf16.msra.mxu0 %v1132
        %1181 = vmatprep.mubr.bf16.mxu0 %v894
        %1182 = vmatmul.mubr.bf16.gmra.mrb[0].mxu0 %v893
        %v1183 = vpop.f32.mrb[0].mxu0
        %v1184 = vadd.f32 0.0, %v1183
        %v1185 = vpop.f32.mrb[0].mxu0
        %v1186 = vpop.f32.mrb[0].mxu0
        %v1187 = vadd.f32 0.0, %v1186
        %v1188 = vpop.f32.mrb[0].mxu0
        %1189 = vmatprep.mubr.bf16.mxu0 %v896
        %1190 = vmatmul.mubr.bf16.gmra.mrb[0].mxu0 %v895
        %v1191 = vpop.f32.mrb[0].mxu0
        %v1192 = vadd.f32 0.0, %v1191
        %v1193 = vpop.f32.mrb[0].mxu0
        %v1194 = vpop.f32.mrb[0].mxu0
        %v1195 = vadd.f32 0.0, %v1194
        %v1196 = vpop.f32.mrb[0].mxu0
        %1197 = vmatprep.mubr.bf16.mxu0 %v898
        %1198 = vmatmul.mubr.bf16.gmra.mrb[0].mxu0 %v897
        %v1199 = vpop.f32.mrb[0].mxu0
        %v1200 = vadd.f32 0.0, %v1199
        %v1201 = vpop.f32.mrb[0].mxu0
        %v1202 = vpop.f32.mrb[0].mxu0
        %v1203 = vadd.f32 0.0, %v1202
        %v1204 = vpop.f32.mrb[0].mxu0
        %1205 = vmatprep.mubr.bf16.mxu0 %v900
        %1206 = vmatmul.mubr.bf16.gmra.mrb[0].mxu0 %v899
        %v1207 = vpop.f32.mrb[0].mxu0
        %v1208 = vadd.f32 0.0, %v1207
        %v1209 = vpop.f32.mrb[0].mxu0
        %v1210 = vpop.f32.mrb[0].mxu0
        %v1211 = vadd.f32 0.0, %v1210
        %v1212 = vpop.f32.mrb[0].mxu0
        %1213 = vmatprep.mubr.bf16.mxu0 %v902
        %1214 = vmatmul.mubr.bf16.gmra.mrb[0].mxu0 %v901
        %v1215 = vpop.f32.mrb[0].mxu0
        %v1216 = vadd.f32 0.0, %v1215
        %v1217 = vpop.f32.mrb[0].mxu0
        %v1218 = vpop.f32.mrb[0].mxu0
        %v1219 = vadd.f32 0.0, %v1218
        %v1220 = vpop.f32.mrb[0].mxu0
        %1221 = vmatprep.mubr.bf16.mxu0 %v904
        %1222 = vmatmul.mubr.bf16.gmra.mrb[0].mxu0 %v903
        %v1223 = vpop.f32.mrb[0].mxu0
        %v1224 = vadd.f32 0.0, %v1223
        %v1225 = vpop.f32.mrb[0].mxu0
        %v1226 = vpop.f32.mrb[0].mxu0
        %v1227 = vadd.f32 0.0, %v1226
        %v1228 = vpop.f32.mrb[0].mxu0
        %1229 = vmatprep.mubr.bf16.mxu0 %v906
        %1230 = vmatmul.mubr.bf16.gmra.mrb[0].mxu0 %v905
        %v1231 = vpop.f32.mrb[0].mxu0
        %v1232 = vadd.f32 0.0, %v1231
        %v1233 = vpop.f32.mrb[0].mxu0
        %v1234 = vpop.f32.mrb[0].mxu0
        %v1235 = vadd.f32 0.0, %v1234
        %v1236 = vpop.f32.mrb[0].mxu0
        %1237 = vmatprep.mubr.bf16.mxu0 %v908
        %1238 = vmatmul.mubr.bf16.gmra.mrb[0].mxu0 %v907
        %v1239 = vpop.f32.mrb[0].mxu0
        %v1240 = vadd.f32 0.0, %v1239
        %v1241 = vpop.f32.mrb[0].mxu0
        %v1242 = vpop.f32.mrb[0].mxu0
        %v1243 = vadd.f32 0.0, %v1242
        %v1244 = vpop.f32.mrb[0].mxu0
        %1245 = vdwg.mxu0
        %v1246 = vld [vmem:[#allocation5] sm:$0xff]
        %v1247 = vld [vmem:[#allocation5 + $0x8] sm:$0xff]
        %v1248 = vld [vmem:[#allocation5 + $0x10] sm:$0xff]
        %v1249 = vld [vmem:[#allocation5 + $0x18] sm:$0xff]
        %v1250 = vld [vmem:[#allocation5 + $0x20] sm:$0xff]
        %v1251 = vld [vmem:[#allocation5 + $0x28] sm:$0xff]
        %v1252 = vld [vmem:[#allocation5 + $0x30] sm:$0xff]
        %v1253 = vld [vmem:[#allocation5 + $0x38] sm:$0xff]
        %v1254 = vld [vmem:[#allocation5 + $0x40] sm:$0xff]
        %v1255 = vld [vmem:[#allocation5 + $0x48] sm:$0xff]
        %v1256 = vld [vmem:[#allocation5 + $0x50] sm:$0xff]
        %v1257 = vld [vmem:[#allocation5 + $0x58] sm:$0xff]
        %v1258 = vld [vmem:[#allocation5 + $0x60] sm:$0xff]
        %v1259 = vld [vmem:[#allocation5 + $0x68] sm:$0xff]
        %v1260 = vld [vmem:[#allocation5 + $0x70] sm:$0xff]
        %v1261 = vld [vmem:[#allocation5 + $0x78] sm:$0xff]
        %v1262 = vmul.f32 %v926, %v1246
        %v1263 = vmul.f32 %v928, %v1247
        %v1264 = vmul.f32 %v930, %v1248
        %v1265 = vmul.f32 %v932, %v1249
        %v1266 = vmul.f32 %v934, %v1250
        %v1267 = vmul.f32 %v936, %v1251
        %v1268 = vmul.f32 %v938, %v1252
        %v1269 = vmul.f32 %v940, %v1253
        %v1270 = vmul.f32 %v942, %v1254
        %v1271 = vmul.f32 %v944, %v1255
        %v1272 = vmul.f32 %v946, %v1256
        %v1273 = vmul.f32 %v948, %v1257
        %v1274 = vmul.f32 %v950, %v1258
        %v1275 = vmul.f32 %v952, %v1259
        %v1276 = vmul.f32 %v954, %v1260
        %v1277 = vmul.f32 %v956, %v1261
        %v1278 = vadd.f32 %v1262, %v1184
        %v1279 = vadd.f32 %v1263, %v1187
        %v1280 = vadd.f32 %v1264, %v1192
        %v1281 = vadd.f32 %v1265, %v1195
        %v1282 = vadd.f32 %v1266, %v1200
        %v1283 = vadd.f32 %v1267, %v1203
        %v1284 = vadd.f32 %v1268, %v1208
        %v1285 = vadd.f32 %v1269, %v1211
        %v1286 = vadd.f32 %v1270, %v1216
        %v1287 = vadd.f32 %v1271, %v1219
        %v1288 = vadd.f32 %v1272, %v1224
        %v1289 = vadd.f32 %v1273, %v1227
        %v1290 = vadd.f32 %v1274, %v1232
        %v1291 = vadd.f32 %v1275, %v1235
        %v1292 = vadd.f32 %v1276, %v1240
        %v1293 = vadd.f32 %v1277, %v1243
        %1294 = vst [vmem:[#allocation5] sm:$0xff] %v1278
        %1295 = vst [vmem:[#allocation5 + $0x8] sm:$0xff] %v1279
        %1296 = vst [vmem:[#allocation5 + $0x10] sm:$0xff] %v1280
        %1297 = vst [vmem:[#allocation5 + $0x18] sm:$0xff] %v1281
        %1298 = vst [vmem:[#allocation5 + $0x20] sm:$0xff] %v1282
        %1299 = vst [vmem:[#allocation5 + $0x28] sm:$0xff] %v1283
        %1300 = vst [vmem:[#allocation5 + $0x30] sm:$0xff] %v1284
        %1301 = vst [vmem:[#allocation5 + $0x38] sm:$0xff] %v1285
        %1302 = vst [vmem:[#allocation5 + $0x40] sm:$0xff] %v1286
        %1303 = vst [vmem:[#allocation5 + $0x48] sm:$0xff] %v1287
        %1304 = vst [vmem:[#allocation5 + $0x50] sm:$0xff] %v1288
        %1305 = vst [vmem:[#allocation5 + $0x58] sm:$0xff] %v1289
        %1306 = vst [vmem:[#allocation5 + $0x60] sm:$0xff] %v1290
        %1307 = vst [vmem:[#allocation5 + $0x68] sm:$0xff] %v1291
        %1308 = vst [vmem:[#allocation5 + $0x70] sm:$0xff] %v1292
        %1309 = vst [vmem:[#allocation5 + $0x78] sm:$0xff] %v1293
        %1310 = vst [vmem:[#allocation3] sm:$0xff] %v733
        %1311 = vst [vmem:[#allocation3 + $0x8] sm:$0xff] %v734
        %1312 = vst [vmem:[#allocation3 + $0x10] sm:$0xff] %v735
        %1313 = vst [vmem:[#allocation3 + $0x18] sm:$0xff] %v736
        %1314 = vst [vmem:[#allocation3 + $0x20] sm:$0xff] %v737
        %1315 = vst [vmem:[#allocation3 + $0x28] sm:$0xff] %v738
        %1316 = vst [vmem:[#allocation3 + $0x30] sm:$0xff] %v739
        %1317 = vst [vmem:[#allocation3 + $0x38] sm:$0xff] %v740
        %1318 = vst [vmem:[#allocation3 + $0x40] sm:$0xff] %v741
        %1319 = vst [vmem:[#allocation3 + $0x48] sm:$0xff] %v742
        %1320 = vst [vmem:[#allocation3 + $0x50] sm:$0xff] %v743
        %1321 = vst [vmem:[#allocation3 + $0x58] sm:$0xff] %v744
        %1322 = vst [vmem:[#allocation3 + $0x60] sm:$0xff] %v745
        %1323 = vst [vmem:[#allocation3 + $0x68] sm:$0xff] %v746
        %1324 = vst [vmem:[#allocation3 + $0x70] sm:$0xff] %v747
        %1325 = vst [vmem:[#allocation3 + $0x78] sm:$0xff] %v748
        %p1326 = scmp.eq.s32.totalorder %s30, 1
        // Predicated region
        $region49: #{tpu_custom_call.1} parent=31 // pred_check
          %p1327 = pneg %p1326
        $region50: #{tpu_custom_call.1} parent=31 // pred_check_branch
          %1329 = sbr.rel (%p1327) target = $region52
        $region51: #{tpu_custom_call.1} parent=31 // pred_region
          %v1330 = vld [vmem:[#allocation4] sm:$0xff]
          %v1331 = vld [vmem:[#allocation4 + $0x8] sm:$0xff]
          %v1332 = vld [vmem:[#allocation4 + $0x10] sm:$0xff]
          %v1333 = vld [vmem:[#allocation4 + $0x18] sm:$0xff]
          %v1334 = vld [vmem:[#allocation4 + $0x20] sm:$0xff]
          %v1335 = vld [vmem:[#allocation4 + $0x28] sm:$0xff]
          %v1336 = vld [vmem:[#allocation4 + $0x30] sm:$0xff]
          %v1337 = vld [vmem:[#allocation4 + $0x38] sm:$0xff]
          %v1338 = vld [vmem:[#allocation4 + $0x40] sm:$0xff]
          %v1339 = vld [vmem:[#allocation4 + $0x48] sm:$0xff]
          %v1340 = vld [vmem:[#allocation4 + $0x50] sm:$0xff]
          %v1341 = vld [vmem:[#allocation4 + $0x58] sm:$0xff]
          %v1342 = vld [vmem:[#allocation4 + $0x60] sm:$0xff]
          %v1343 = vld [vmem:[#allocation4 + $0x68] sm:$0xff]
          %v1344 = vld [vmem:[#allocation4 + $0x70] sm:$0xff]
          %v1345 = vld [vmem:[#allocation4 + $0x78] sm:$0xff]
          %v1346 = vrcp.pop %v1330
          %v1347 = vrcp.pop %v1331
          %v1348 = vrcp.pop %v1332
          %v1349 = vrcp.pop %v1333
          %v1350 = vrcp.pop %v1334
          %v1351 = vrcp.pop %v1335
          %v1352 = vrcp.pop %v1336
          %v1353 = vrcp.pop %v1337
          %v1354 = vrcp.pop %v1338
          %v1355 = vrcp.pop %v1339
          %v1356 = vrcp.pop %v1340
          %v1357 = vrcp.pop %v1341
          %v1358 = vrcp.pop %v1342
          %v1359 = vrcp.pop %v1343
          %v1360 = vrcp.pop %v1344
          %v1361 = vrcp.pop %v1345
          %v1362 = vld [vmem:[#allocation5] sm:$0xff]
          %v1363 = vld [vmem:[#allocation5 + $0x8] sm:$0xff]
          %v1364 = vld [vmem:[#allocation5 + $0x10] sm:$0xff]
          %v1365 = vld [vmem:[#allocation5 + $0x18] sm:$0xff]
          %v1366 = vld [vmem:[#allocation5 + $0x20] sm:$0xff]
          %v1367 = vld [vmem:[#allocation5 + $0x28] sm:$0xff]
          %v1368 = vld [vmem:[#allocation5 + $0x30] sm:$0xff]
          %v1369 = vld [vmem:[#allocation5 + $0x38] sm:$0xff]
          %v1370 = vld [vmem:[#allocation5 + $0x40] sm:$0xff]
          %v1371 = vld [vmem:[#allocation5 + $0x48] sm:$0xff]
          %v1372 = vld [vmem:[#allocation5 + $0x50] sm:$0xff]
          %v1373 = vld [vmem:[#allocation5 + $0x58] sm:$0xff]
          %v1374 = vld [vmem:[#allocation5 + $0x60] sm:$0xff]
          %v1375 = vld [vmem:[#allocation5 + $0x68] sm:$0xff]
          %v1376 = vld [vmem:[#allocation5 + $0x70] sm:$0xff]
          %v1377 = vld [vmem:[#allocation5 + $0x78] sm:$0xff]
          %v1378 = vmul.f32 %v1362, %v1346
          %v1379 = vmul.f32 %v1363, %v1347
          %v1380 = vmul.f32 %v1364, %v1348
          %v1381 = vmul.f32 %v1365, %v1349
          %v1382 = vmul.f32 %v1366, %v1350
          %v1383 = vmul.f32 %v1367, %v1351
          %v1384 = vmul.f32 %v1368, %v1352
          %v1385 = vmul.f32 %v1369, %v1353
          %v1386 = vmul.f32 %v1370, %v1354
          %v1387 = vmul.f32 %v1371, %v1355
          %v1388 = vmul.f32 %v1372, %v1356
          %v1389 = vmul.f32 %v1373, %v1357
          %v1390 = vmul.f32 %v1374, %v1358
          %v1391 = vmul.f32 %v1375, %v1359
          %v1392 = vmul.f32 %v1376, %v1360
          %v1393 = vmul.f32 %v1377, %v1361
          %v1394 = vpack.c.bf16 %v1379, %v1378
          %v1395 = vpack.c.bf16 %v1381, %v1380
          %v1396 = vpack.c.bf16 %v1383, %v1382
          %v1397 = vpack.c.bf16 %v1385, %v1384
          %v1398 = vpack.c.bf16 %v1387, %v1386
          %v1399 = vpack.c.bf16 %v1389, %v1388
          %v1400 = vpack.c.bf16 %v1391, %v1390
          %v1401 = vpack.c.bf16 %v1393, %v1392
          %v1410 = vunpack.c.l.b16 %v1394
          %v1411 = vunpack.c.h.b16 %v1394
          %v1412 = vunpack.c.l.b16 %v1395
          %v1413 = vunpack.c.h.b16 %v1395
          %v1414 = vunpack.c.l.b16 %v1396
          %v1415 = vunpack.c.h.b16 %v1396
          %v1416 = vunpack.c.l.b16 %v1397
          %v1417 = vunpack.c.h.b16 %v1397
          %v1418 = vunpack.c.l.b16 %v1398
          %v1419 = vunpack.c.h.b16 %v1398
          %v1420 = vunpack.c.l.b16 %v1399
          %v1421 = vunpack.c.h.b16 %v1399
          %v1422 = vunpack.c.l.b16 %v1400
          %v1423 = vunpack.c.h.b16 %v1400
          %v1424 = vunpack.c.l.b16 %v1401
          %v1425 = vunpack.c.h.b16 %v1401
          %v1426 = vpack.c.b16 %v1410, %v1410
          %v1427 = vpack.c.b16 %v1411, %v1411
          %v1428 = vpack.c.b16 %v1412, %v1412
          %v1429 = vpack.c.b16 %v1413, %v1413
          %v1430 = vpack.c.b16 %v1414, %v1414
          %v1431 = vpack.c.b16 %v1415, %v1415
          %v1432 = vpack.c.b16 %v1416, %v1416
          %v1433 = vpack.c.b16 %v1417, %v1417
          %v1434 = vpack.c.b16 %v1418, %v1418
          %v1435 = vpack.c.b16 %v1419, %v1419
          %v1436 = vpack.c.b16 %v1420, %v1420
          %v1437 = vpack.c.b16 %v1421, %v1421
          %v1438 = vpack.c.b16 %v1422, %v1422
          %v1439 = vpack.c.b16 %v1423, %v1423
          %v1440 = vpack.c.b16 %v1424, %v1424
          %v1441 = vpack.c.b16 %v1425, %v1425
          %1458 = vst [vmem:[%s298] sm:$0xf] %v1426
          %1459 = vst [vmem:[%s298 + $0x4] sm:$0xf] %v1427
          %1460 = vst [vmem:[%s298 + $0x8] sm:$0xf] %v1428
          %1461 = vst [vmem:[%s298 + $0xc] sm:$0xf] %v1429
          %1462 = vst [vmem:[%s298 + $0x10] sm:$0xf] %v1430
          %1463 = vst [vmem:[%s298 + $0x14] sm:$0xf] %v1431
          %1464 = vst [vmem:[%s298 + $0x18] sm:$0xf] %v1432
          %1465 = vst [vmem:[%s298 + $0x1c] sm:$0xf] %v1433
          %1466 = vst [vmem:[%s298 + $0x20] sm:$0xf] %v1434
          %1467 = vst [vmem:[%s298 + $0x24] sm:$0xf] %v1435
          %1468 = vst [vmem:[%s298 + $0x28] sm:$0xf] %v1436
          %1469 = vst [vmem:[%s298 + $0x2c] sm:$0xf] %v1437
          %1470 = vst [vmem:[%s298 + $0x30] sm:$0xf] %v1438
          %1471 = vst [vmem:[%s298 + $0x34] sm:$0xf] %v1439
          %1472 = vst [vmem:[%s298 + $0x38] sm:$0xf] %v1440
          %1473 = vst [vmem:[%s298 + $0x3c] sm:$0xf] %v1441
        $region52: #{tpu_custom_call.1} parent=31 // pred_fallthru
          _
        %s1474 = sand.u32 %s136, 1
        %s1475 = scalar_lea.sflag [#allocation8], %s1474
        %s1476 = sand.u32 %s136, 1
        %s1477 = smul.addr %s1476, 64
        %s1478 = scalar_lea.vmem [#allocation12], %s1477
        // Predicated region
        $region53: #{tpu_custom_call.1} parent=31 // pred_check
          %p1479 = pneg %p146
        $region54: #{tpu_custom_call.1} parent=31 // pred_check_branch
          %1481 = sbr.rel (%p1479) target = $region56
        $region55: #{tpu_custom_call.1} parent=31 // pred_region
          %s1482 = smul.u32 16, %s29
          %s1484 = ssub.s32 1024, 1024
          %1485 = vsyncadd %s1475, %s1484
          %s1486 = smul.addr %s28, 64
          %s1487 = sadd.s32 %s1482, %s1486
          %s1488 = smul.addr %s1487, 64
          %s1489 = scalar_lea.hbm %s3, %s1488
          %s1490 = sshll.u32 %s1478, 4
          %s1491 = int_to_ptr.vmem [resolvable:$true] %s1490
          %1496 = dma.vmem_to_hbm [thread:$0]  %s1491, 1024, %s1489, %s1475, 64, 64, 4
        $region56: #{tpu_custom_call.1} parent=31 // pred_fallthru
          _
      $region32: #{tpu_custom_call.1} parent=5 // pred_fallthru
        _
      %p1497 = scmp.le.s32.totalorder 2, %s18
      // Predicated region
      $region57: #{tpu_custom_call.1} parent=5 // pred_check
        %p1498 = pneg %p1497
      $region58: #{tpu_custom_call.1} parent=5 // pred_check_branch
        %1500 = sbr.rel (%p1498) target = $region60
      $region59: #{tpu_custom_call.1} parent=5 // pred_region
        %s1501 = ssub.s32 %s18, 2
        // Predicated region
        $region61: #{tpu_custom_call.1} parent=59 // pred_check
          %p1502 = pneg %p152
        $region62: #{tpu_custom_call.1} parent=59 // pred_check_branch
          %1504 = sbr.rel (%p1502) target = $region64
        $region63: #{tpu_custom_call.1} parent=59 // pred_region
          %s1505 = sand.u32 %s137, 1
          %s1506 = scalar_lea.sflag [#allocation8], %s1505
          %s1507 = sand.u32 %s137, 1
          %s1508 = smul.addr %s1507, 64
          %s1509 = scalar_lea.vmem [#allocation12], %s1508
          %1510 = dma.done %s1506, 1024
        $region64: #{tpu_custom_call.1} parent=59 // pred_fallthru
          _
      $region60: #{tpu_custom_call.1} parent=5 // pred_fallthru
        _
    $region6: #{tpu_custom_call.1} parent=1 // loop_footer
      %s22 = sadd.s32 1, %s18
    $region7: #{tpu_custom_call.1} parent=1 // loop_footer_branch
      %17 = sbr.rel target = $region3
    $region8: #{tpu_custom_call.1} parent=1 // loop_exit
      _
    %1511 = vsyncpa [#allocation7], 1
    %s1512 = scalar_lea.sflag [#allocation7], 1
    %1513 = vsyncpa %s1512, 1
    %1514 = vsyncpa [#allocation10], 1
    %s1515 = scalar_lea.sflag [#allocation10], 1
    %1516 = vsyncpa %s1515, 1
    %1517 = vsyncpa [#allocation8], 1
    %s1518 = scalar_lea.sflag [#allocation8], 1
    %1519 = vsyncpa %s1518, 1

</llo_original>
